<compile_context>
chip_gen: v5e
topology: v5e:2x2
jax: 0.10.0
libtpu: 0.0.40
codegen_flags: <defaults>
</compile_context>

<pallas_src>
import math

import jax
import jax.numpy as jnp
from jax.experimental import pallas as pl
from jax.experimental.pallas import tpu as pltpu

RATIO = 0.5  # TODO(synk): get_value('ratio') is external global state in the
             # reference repo; fixed deterministically to 0.5 here.


def _round_up(x, m):
    return (x + m - 1) // m * m


# ----------------------------- Pallas kernels ------------------------------ #

def _abs_mean_kernel(x_ref, o_ref):
    # x_ref: (tile_r, H*W) rows of |x| flattened per (batch, channel).
    o_ref[...] = jnp.mean(jnp.abs(x_ref[...]), axis=-1, keepdims=True)


def _gate_mlp_kernel(s_ref, w1_ref, b1_ref, w2_ref, b2_ref, g_ref):
    # s_ref: (B, C_in) pooled abs-means. Linear -> ReLU -> Linear -> 1.5*sigmoid.
    h = jnp.dot(s_ref[...], w1_ref[...], preferred_element_type=jnp.float32) + b1_ref[...]
    h = jnp.maximum(h, 0.0)
    logits = jnp.dot(h, w2_ref[...], preferred_element_type=jnp.float32) + b2_ref[...]
    g_ref[...] = 1.5 * jax.nn.sigmoid(logits)


def _conv3x3_kernel(xp_ref, w_ref, y_ref, stat_ref):
    # xp_ref  : (1, H+2, W+2, C_in)  zero-padded NHWC input block, bf16
    # w_ref   : (9, C_in, Nm)        tap-major weights, out-channels padded, bf16
    # y_ref   : (1, C_out_p, H*W)    conv output, channel-major (lane-dense H*W)
    # stat_ref: (1, 8, Nm)           row 0 = per-channel sum, row 1 = sum of squares
    H = xp_ref.shape[1] - 2
    W = xp_ref.shape[2] - 2
    Nm = w_ref.shape[2]
    C_in = xp_ref.shape[3]

    xv = xp_ref[0]                                            # (H+2, W+2, C_in)
    acc = jnp.zeros((H * W, Nm), jnp.float32)
    for kh in range(3):
        for kw in range(3):
            tap = xv[kh:kh + H, kw:kw + W, :].reshape(H * W, C_in)
            acc = acc + jnp.dot(tap, w_ref[kh * 3 + kw],
                                preferred_element_type=jnp.float32)

    # Per-batch partial BN statistics (combined over B in cheap JAX glue).
    stat_ref[0, 0:1, :] = jnp.sum(acc, axis=0, keepdims=True)
    stat_ref[0, 1:2, :] = jnp.sum(acc * acc, axis=0, keepdims=True)

    # Transpose in VMEM -> channel-major output; padded channels sliced off.
    y_ref[0] = acc.T[:y_ref.shape[1], :]


def _bn_gate_kernel(y_ref, a_ref, c_ref, o_ref):
    # out[b, c, hw] = y[b, c, hw] * A[b, c] + C[b, c]
    # where A = gamma*rsqrt(var+eps)*gate and C = (beta - mean*gamma*rsqrt)*gate.
    o_ref[...] = y_ref[...] * a_ref[...] + c_ref[...]


# ------------------------------ wrappers ------------------------------------ #

def _abs_spatial_mean(x_nchw):
    B, C, H, W = x_nchw.shape
    HW = H * W
    R = B * C
    R_pad = _round_up(R, 8)
    x2 = x_nchw.reshape(R, HW)
    if R_pad != R:
        x2 = jnp.pad(x2, ((0, R_pad - R), (0, 0)))
    tile_r = 8
    for cand in (1024, 512, 256, 128, 64, 32, 16, 8):
        if R_pad % cand == 0:
            tile_r = cand
            break
    pooled = pl.pallas_call(
        _abs_mean_kernel,
        out_shape=jax.ShapeDtypeStruct((R_pad, 1), jnp.float32),
        grid=(R_pad // tile_r,),
        in_specs=[pl.BlockSpec((tile_r, HW), lambda i: (i, 0))],
        out_specs=pl.BlockSpec((tile_r, 1), lambda i: (i, 0)),
        compiler_params=pltpu.CompilerParams(dimension_semantics=("parallel",)),
    )(x2)
    return pooled[:R].reshape(B, C)


def _gate_mlp(ss, w1, b1, w2, b2):
    B, C_in = ss.shape
    C_h = w1.shape[1]
    C_out = w2.shape[1]
    return pl.pallas_call(
        _gate_mlp_kernel,
        out_shape=jax.ShapeDtypeStruct((B, C_out), jnp.float32),
        grid=(1,),
        in_specs=[
            pl.BlockSpec((B, C_in), lambda i: (0, 0)),
            pl.BlockSpec((C_in, C_h), lambda i: (0, 0)),
            pl.BlockSpec((1, C_h), lambda i: (0, 0)),
            pl.BlockSpec((C_h, C_out), lambda i: (0, 0)),
            pl.BlockSpec((1, C_out), lambda i: (0, 0)),
        ],
        out_specs=pl.BlockSpec((B, C_out), lambda i: (0, 0)),
    )(ss, w1, b1.reshape(1, C_h), w2, b2.reshape(1, C_out))


def _conv3x3(x_nchw, w_conv):
    B, C_in, H, W = x_nchw.shape
    C_out = w_conv.shape[0]
    C_out_p = _round_up(C_out, 8)       # sublane-aligned channel-major output
    N_mxu = _round_up(C_out, 128)       # lane-dense matmul N dimension
    HW = H * W

    # Zero-padded NHWC input, cast to bf16 for the MXU (f32 accumulation).
    xp = jnp.pad(jnp.transpose(x_nchw, (0, 2, 3, 1)),
                 ((0, 0), (1, 1), (1, 1), (0, 0))).astype(jnp.bfloat16)

    # (C_out, C_in, 3, 3) -> (9, C_in, N_mxu), tap-major (kh, kw), zero-padded N.
    w_t = jnp.transpose(w_conv, (2, 3, 1, 0)).reshape(9, C_in, C_out)
    w_t = jnp.pad(w_t, ((0, 0), (0, 0), (0, N_mxu - C_out))).astype(jnp.bfloat16)

    y_t, stats = pl.pallas_call(
        _conv3x3_kernel,
        out_shape=(jax.ShapeDtypeStruct((B, C_out_p, HW), jnp.float32),
                   jax.ShapeDtypeStruct((B, 8, N_mxu), jnp.float32)),
        grid=(B,),
        in_specs=[
            pl.BlockSpec((1, H + 2, W + 2, C_in), lambda b: (b, 0, 0, 0)),
            pl.BlockSpec((9, C_in, N_mxu), lambda b: (0, 0, 0)),
        ],
        out_specs=(
            pl.BlockSpec((1, C_out_p, HW), lambda b: (b, 0, 0)),
            pl.BlockSpec((1, 8, N_mxu), lambda b: (b, 0, 0)),
        ),
        compiler_params=pltpu.CompilerParams(dimension_semantics=("parallel",)),
    )(xp, w_t)
    return y_t, stats


def _bn_gate(y_t, scale_bc, shift_bc):
    B, C_out_p, HW = y_t.shape
    return pl.pallas_call(
        _bn_gate_kernel,
        out_shape=jax.ShapeDtypeStruct((B, C_out_p, HW), jnp.float32),
        grid=(B,),
        in_specs=[
            pl.BlockSpec((1, C_out_p, HW), lambda b: (b, 0, 0)),
            pl.BlockSpec((1, C_out_p, 1), lambda b: (b, 0, 0)),
            pl.BlockSpec((1, C_out_p, 1), lambda b: (b, 0, 0)),
        ],
        out_specs=pl.BlockSpec((1, C_out_p, HW), lambda b: (b, 0, 0)),
        compiler_params=pltpu.CompilerParams(dimension_semantics=("parallel",)),
    )(y_t, scale_bc, shift_bc)


def gated_conv_bn_forward(x, params):
    B, C_in, H, W = x.shape
    C_out = params["conv_w"].shape[0]
    C_out_p = _round_up(C_out, 8)
    HW = H * W

    # --- gate path: abs spatial mean (Pallas) + tiny MLP + 1.5*sigmoid (Pallas)
    ss = _abs_spatial_mean(x)                                   # (B, C_in)
    gate_out = _gate_mlp(ss, params["g_w1"], params["g_b1"],
                         params["g_w2"], params["g_b2"])        # (B, C_out)

    # --- channel selection: zero the `inactive` smallest gates (tiny,
    # data-dependent top-k + scatter kept in plain JAX).
    inactive = C_out - int(round(C_out * RATIO))
    if inactive > 0:
        _, idx = jax.lax.top_k(-gate_out, inactive)             # (B, inactive)
        mask = jnp.ones((B, C_out), jnp.float32)
        mask = mask.at[jnp.arange(B)[:, None], idx].set(0.0)
        active = gate_out * mask
    else:
        active = gate_out                                       # (B, C_out)

    # --- conv (fused im2col, bf16 MXU, f32 accumulate), channel-major output.
    # Conv bias is intentionally not applied: training-mode BN subtracts the
    # batch mean, so a per-channel bias cancels exactly.
    y_t, stats = _conv3x3(x, params["conv_w"])      # (B, C_out_p, HW), (B, 8, Nm)

    # --- BatchNorm batch statistics (tiny (B, C) reductions in plain JAX).
    n = float(B * HW)
    ch_sum = jnp.sum(stats[:, 0, :C_out_p], axis=0)
    ch_sumsq = jnp.sum(stats[:, 1, :C_out_p], axis=0)
    mean = ch_sum / n
    var = jnp.maximum(ch_sumsq / n - mean * mean, 0.0)          # biased var
    gamma = jnp.pad(params["bn_g"], (0, C_out_p - C_out), constant_values=1.0)
    beta = jnp.pad(params["bn_b"], (0, C_out_p - C_out))
    inv = gamma * jax.lax.rsqrt(var + 1e-5)
    active_p = jnp.pad(active, ((0, 0), (0, C_out_p - C_out)))  # (B, C_out_p)
    scale_bc = (inv[None, :] * active_p).reshape(B, C_out_p, 1)
    shift_bc = (((beta - mean * inv))[None, :] * active_p).reshape(B, C_out_p, 1)

    # --- fused BN-affine + gating; output is already NCHW-flat (no transpose).
    out = _bn_gate(y_t, scale_bc, shift_bc)                     # (B, C_out_p, HW)
    return out[:, :C_out, :].reshape(B, C_out, H, W)


def init_params(key, C_in, C_out):
    ks = jax.random.split(key, 4)
    fan_in = C_in * 9
    bound = 1.0 / math.sqrt(fan_in)
    # Conv2d default init (kaiming-uniform-style bounds); deterministic.
    conv_w = jax.random.uniform(ks[0], (C_out, C_in, 3, 3), jnp.float32, -bound, bound)
    # conv_b exists in the module but is mathematically cancelled by the
    # training-mode BatchNorm, so it is not applied in the forward pass.
    conv_b = jax.random.uniform(ks[1], (C_out,), jnp.float32, -bound, bound)
    # gate Linears: weight ~ N(0, sqrt(2/in_features)), bias = 0 (as in module).
    g_w1 = jax.random.normal(ks[2], (C_in, 10), jnp.float32) * math.sqrt(2.0 / C_in)
    g_b1 = jnp.zeros((10,), jnp.float32)
    g_w2 = jax.random.normal(ks[3], (10, C_out), jnp.float32) * math.sqrt(2.0 / 10.0)
    g_b2 = jnp.zeros((C_out,), jnp.float32)
    # BatchNorm2d default init: gamma = 1, beta = 0.
    bn_g = jnp.ones((C_out,), jnp.float32)
    bn_b = jnp.zeros((C_out,), jnp.float32)
    return dict(conv_w=conv_w, conv_b=conv_b,
                g_w1=g_w1, g_b1=g_b1, g_w2=g_w2, g_b2=g_b2,
                bn_g=bn_g, bn_b=bn_b)


if __name__ == "__main__":
    key = jax.random.PRNGKey(0)
    kx, kp = jax.random.split(key)
    B, C_in, C_out, H, W = 2, 4, 8, 16, 16
    x = jax.random.normal(kx, (B, C_in, H, W), jnp.float32)
    params = init_params(kp, C_in, C_out)

    out = jax.jit(gated_conv_bn_forward)(x, params)
    jax.block_until_ready(out)
    assert out.shape == (B, C_out, H, W)
    assert out.dtype == jnp.float32
    assert bool(jnp.all(jnp.isfinite(out)))
    print("KERNEL_OK")
</pallas_src>

<mosaic_0001>
module attributes {stable_mosaic.version = 11 : i64} {
  func.func @_abs_mean_kernel(%arg0: i32, %arg1: memref<8x256xf32, #tpu.memory_space<vmem>>, %arg2: memref<8x1xf32, #tpu.memory_space<vmem>>) attributes {dimension_semantics = [#tpu.dimension_semantics<parallel>], iteration_bounds = array<i64: 1>, scalar_prefetch = 0 : i64, scratch_operands = 0 : i64, tpu.core_type = #tpu.core_type<tc>, window_params = [{transform_indices = @transform_0, window_bounds = array<i64: 8, 256>}, {transform_indices = @transform_1, window_bounds = array<i64: 8, 1>}]} {
    %c0 = arith.constant 0 : index
    %c0_0 = arith.constant 0 : index
    %0 = vector.load %arg1[%c0, %c0_0] : memref<8x256xf32, #tpu.memory_space<vmem>>, vector<8x256xf32>
    %1 = math.absf %0 : vector<8x256xf32>
    %cst = arith.constant dense<0.000000e+00> : vector<8xf32>
    %2 = vector.multi_reduction <add>, %1, %cst [1] : vector<8x256xf32> to vector<8xf32>
    %3 = vector.shape_cast %2 : vector<8xf32> to vector<8x1xf32>
    %cst_1 = arith.constant 2.560000e+02 : f32
    %4 = vector.broadcast %cst_1 : f32 to vector<8x1xf32>
    %5 = arith.divf %3, %4 : vector<8x1xf32>
    %c0_2 = arith.constant 0 : index
    %c0_3 = arith.constant 0 : index
    %6 = vector.load %arg2[%c0_2, %c0_3] : memref<8x1xf32, #tpu.memory_space<vmem>>, vector<8x1xf32>
    tpu.vector_store %arg2[%c0_2, %c0_3], %5 {strides = array<i32>} : memref<8x1xf32, #tpu.memory_space<vmem>>, vector<8x1xf32>,
    return
  }
  func.func @transform_0(%arg0: i32) -> (i32, i32) {
    %c0_i32 = arith.constant 0 : i32
    %c0_i32_0 = arith.constant 0 : i32
    return %arg0, %c0_i32 : i32, i32
  }
  func.func @transform_1(%arg0: i32) -> (i32, i32) {
    %c0_i32 = arith.constant 0 : i32
    %c0_i32_0 = arith.constant 0 : i32
    return %arg0, %c0_i32 : i32, i32
  }
}

module attributes {stable_mosaic.version = 11 : i64} {
  func.func @_conv3x3_kernel(%arg0: i32, %arg1: memref<1x18x18x4xbf16, #tpu.memory_space<vmem>>, %arg2: memref<9x4x128xbf16, #tpu.memory_space<vmem>>, %arg3: memref<1x8x256xf32, #tpu.memory_space<vmem>>, %arg4: memref<1x8x128xf32, #tpu.memory_space<vmem>>) attributes {dimension_semantics = [#tpu.dimension_semantics<parallel>], iteration_bounds = array<i64: 2>, scalar_prefetch = 0 : i64, scratch_operands = 0 : i64, tpu.core_type = #tpu.core_type<tc>, window_params = [{transform_indices = @transform_0, window_bounds = array<i64: 1, 18, 18, 4>}, {pipeline_mode = #tpu.pipeline_mode<synchronous>, transform_indices = @transform_1, window_bounds = array<i64: 9, 4, 128>}, {transform_indices = @transform_2, window_bounds = array<i64: 1, 8, 256>}, {transform_indices = @transform_3, window_bounds = array<i64: 1, 8, 128>}]} {
    %c0 = arith.constant 0 : index
    %c0_0 = arith.constant 0 : index
    %c0_1 = arith.constant 0 : index
    %c0_2 = arith.constant 0 : index
    %0 = vector.load %arg1[%c0, %c0_0, %c0_1, %c0_2] : memref<1x18x18x4xbf16, #tpu.memory_space<vmem>>, vector<1x18x18x4xbf16>
    %1 = vector.shape_cast %0 : vector<1x18x18x4xbf16> to vector<18x18x4xbf16>
    %cst = arith.constant 0.000000e+00 : f32
    %2 = vector.broadcast %cst : f32 to vector<256x128xf32>
    %3 = vector.extract_strided_slice %1 {offsets = [0, 0, 0], sizes = [16, 16, 4], strides = [1, 1, 1]} : vector<18x18x4xbf16> to vector<16x16x4xbf16>
    %4 = vector.shape_cast %3 : vector<16x16x4xbf16> to vector<256x4xbf16>
    %c0_3 = arith.constant 0 : index
    %c0_4 = arith.constant 0 : index
    %c0_5 = arith.constant 0 : index
    %5 = vector.load %arg2[%c0_3, %c0_4, %c0_5] : memref<9x4x128xbf16, #tpu.memory_space<vmem>>, vector<1x4x128xbf16>
    %6 = vector.shape_cast %5 : vector<1x4x128xbf16> to vector<4x128xbf16>
    %cst_6 = arith.constant dense<0.000000e+00> : vector<256x128xf32>
    %7 = tpu.matmul %4, %6, %cst_6 {dimension_numbers = #tpu.dot_dimension_numbers<[1], [0], [0], [1], [0, 0, 1, 1], [], []>} : vector<256x4xbf16>, vector<4x128xbf16>, vector<256x128xf32> -> vector<256x128xf32>
    %8 = arith.addf %2, %7 : vector<256x128xf32>
    %9 = vector.extract_strided_slice %1 {offsets = [0, 1, 0], sizes = [16, 16, 4], strides = [1, 1, 1]} : vector<18x18x4xbf16> to vector<16x16x4xbf16>
    %10 = vector.shape_cast %9 : vector<16x16x4xbf16> to vector<256x4xbf16>
    %c1 = arith.constant 1 : index
    %c0_7 = arith.constant 0 : index
    %c0_8 = arith.constant 0 : index
    %11 = vector.load %arg2[%c1, %c0_7, %c0_8] : memref<9x4x128xbf16, #tpu.memory_space<vmem>>, vector<1x4x128xbf16>
    %12 = vector.shape_cast %11 : vector<1x4x128xbf16> to vector<4x128xbf16>
    %cst_9 = arith.constant dense<0.000000e+00> : vector<256x128xf32>
    %13 = tpu.matmul %10, %12, %cst_9 {dimension_numbers = #tpu.dot_dimension_numbers<[1], [0], [0], [1], [0, 0, 1, 1], [], []>} : vector<256x4xbf16>, vector<4x128xbf16>, vector<256x128xf32> -> vector<256x128xf32>
    %14 = arith.addf %8, %13 : vector<256x128xf32>
    %15 = vector.extract_strided_slice %1 {offsets = [0, 2, 0], sizes = [16, 16, 4], strides = [1, 1, 1]} : vector<18x18x4xbf16> to vector<16x16x4xbf16>
    %16 = vector.shape_cast %15 : vector<16x16x4xbf16> to vector<256x4xbf16>
    %c2 = arith.constant 2 : index
    %c0_10 = arith.constant 0 : index
    %c0_11 = arith.constant 0 : index
    %17 = vector.load %arg2[%c2, %c0_10, %c0_11] : memref<9x4x128xbf16, #tpu.memory_space<vmem>>, vector<1x4x128xbf16>
    %18 = vector.shape_cast %17 : vector<1x4x128xbf16> to vector<4x128xbf16>
    %cst_12 = arith.constant dense<0.000000e+00> : vector<256x128xf32>
    %19 = tpu.matmul %16, %18, %cst_12 {dimension_numbers = #tpu.dot_dimension_numbers<[1], [0], [0], [1], [0, 0, 1, 1], [], []>} : vector<256x4xbf16>, vector<4x128xbf16>, vector<256x128xf32> -> vector<256x128xf32>
    %20 = arith.addf %14, %19 : vector<256x128xf32>
    %21 = vector.extract_strided_slice %1 {offsets = [1, 0, 0], sizes = [16, 16, 4], strides = [1, 1, 1]} : vector<18x18x4xbf16> to vector<16x16x4xbf16>
    %22 = vector.shape_cast %21 : vector<16x16x4xbf16> to vector<256x4xbf16>
    %c3 = arith.constant 3 : index
    %c0_13 = arith.constant 0 : index
    %c0_14 = arith.constant 0 : index
    %23 = vector.load %arg2[%c3, %c0_13, %c0_14] : memref<9x4x128xbf16, #tpu.memory_space<vmem>>, vector<1x4x128xbf16>
    %24 = vector.shape_cast %23 : vector<1x4x128xbf16> to vector<4x128xbf16>
    %cst_15 = arith.constant dense<0.000000e+00> : vector<256x128xf32>
    %25 = tpu.matmul %22, %24, %cst_15 {dimension_numbers = #tpu.dot_dimension_numbers<[1], [0], [0], [1], [0, 0, 1, 1], [], []>} : vector<256x4xbf16>, vector<4x128xbf16>, vector<256x128xf32> -> vector<256x128xf32>
    %26 = arith.addf %20, %25 : vector<256x128xf32>
    %27 = vector.extract_strided_slice %1 {offsets = [1, 1, 0], sizes = [16, 16, 4], strides = [1, 1, 1]} : vector<18x18x4xbf16> to vector<16x16x4xbf16>
    %28 = vector.shape_cast %27 : vector<16x16x4xbf16> to vector<256x4xbf16>
    %c4 = arith.constant 4 : index
    %c0_16 = arith.constant 0 : index
    %c0_17 = arith.constant 0 : index
    %29 = vector.load %arg2[%c4, %c0_16, %c0_17] : memref<9x4x128xbf16, #tpu.memory_space<vmem>>, vector<1x4x128xbf16>
    %30 = vector.shape_cast %29 : vector<1x4x128xbf16> to vector<4x128xbf16>
    %cst_18 = arith.constant dense<0.000000e+00> : vector<256x128xf32>
    %31 = tpu.matmul %28, %30, %cst_18 {dimension_numbers = #tpu.dot_dimension_numbers<[1], [0], [0], [1], [0, 0, 1, 1], [], []>} : vector<256x4xbf16>, vector<4x128xbf16>, vector<256x128xf32> -> vector<256x128xf32>
    %32 = arith.addf %26, %31 : vector<256x128xf32>
    %33 = vector.extract_strided_slice %1 {offsets = [1, 2, 0], sizes = [16, 16, 4], strides = [1, 1, 1]} : vector<18x18x4xbf16> to vector<16x16x4xbf16>
    %34 = vector.shape_cast %33 : vector<16x16x4xbf16> to vector<256x4xbf16>
    %c5 = arith.constant 5 : index
    %c0_19 = arith.constant 0 : index
    %c0_20 = arith.constant 0 : index
    %35 = vector.load %arg2[%c5, %c0_19, %c0_20] : memref<9x4x128xbf16, #tpu.memory_space<vmem>>, vector<1x4x128xbf16>
    %36 = vector.shape_cast %35 : vector<1x4x128xbf16> to vector<4x128xbf16>
    %cst_21 = arith.constant dense<0.000000e+00> : vector<256x128xf32>
    %37 = tpu.matmul %34, %36, %cst_21 {dimension_numbers = #tpu.dot_dimension_numbers<[1], [0], [0], [1], [0, 0, 1, 1], [], []>} : vector<256x4xbf16>, vector<4x128xbf16>, vector<256x128xf32> -> vector<256x128xf32>
    %38 = arith.addf %32, %37 : vector<256x128xf32>
    %39 = vector.extract_strided_slice %1 {offsets = [2, 0, 0], sizes = [16, 16, 4], strides = [1, 1, 1]} : vector<18x18x4xbf16> to vector<16x16x4xbf16>
    %40 = vector.shape_cast %39 : vector<16x16x4xbf16> to vector<256x4xbf16>
    %c6 = arith.constant 6 : index
    %c0_22 = arith.constant 0 : index
    %c0_23 = arith.constant 0 : index
    %41 = vector.load %arg2[%c6, %c0_22, %c0_23] : memref<9x4x128xbf16, #tpu.memory_space<vmem>>, vector<1x4x128xbf16>
    %42 = vector.shape_cast %41 : vector<1x4x128xbf16> to vector<4x128xbf16>
    %cst_24 = arith.constant dense<0.000000e+00> : vector<256x128xf32>
    %43 = tpu.matmul %40, %42, %cst_24 {dimension_numbers = #tpu.dot_dimension_numbers<[1], [0], [0], [1], [0, 0, 1, 1], [], []>} : vector<256x4xbf16>, vector<4x128xbf16>, vector<256x128xf32> -> vector<256x128xf32>
    %44 = arith.addf %38, %43 : vector<256x128xf32>
    %45 = vector.extract_strided_slice %1 {offsets = [2, 1, 0], sizes = [16, 16, 4], strides = [1, 1, 1]} : vector<18x18x4xbf16> to vector<16x16x4xbf16>
    %46 = vector.shape_cast %45 : vector<16x16x4xbf16> to vector<256x4xbf16>
    %c7 = arith.constant 7 : index
    %c0_25 = arith.constant 0 : index
    %c0_26 = arith.constant 0 : index
    %47 = vector.load %arg2[%c7, %c0_25, %c0_26] : memref<9x4x128xbf16, #tpu.memory_space<vmem>>, vector<1x4x128xbf16>
    %48 = vector.shape_cast %47 : vector<1x4x128xbf16> to vector<4x128xbf16>
    %cst_27 = arith.constant dense<0.000000e+00> : vector<256x128xf32>
    %49 = tpu.matmul %46, %48, %cst_27 {dimension_numbers = #tpu.dot_dimension_numbers<[1], [0], [0], [1], [0, 0, 1, 1], [], []>} : vector<256x4xbf16>, vector<4x128xbf16>, vector<256x128xf32> -> vector<256x128xf32>
    %50 = arith.addf %44, %49 : vector<256x128xf32>
    %51 = vector.extract_strided_slice %1 {offsets = [2, 2, 0], sizes = [16, 16, 4], strides = [1, 1, 1]} : vector<18x18x4xbf16> to vector<16x16x4xbf16>
    %52 = vector.shape_cast %51 : vector<16x16x4xbf16> to vector<256x4xbf16>
    %c8 = arith.constant 8 : index
    %c0_28 = arith.constant 0 : index
    %c0_29 = arith.constant 0 : index
    %53 = vector.load %arg2[%c8, %c0_28, %c0_29] : memref<9x4x128xbf16, #tpu.memory_space<vmem>>, vector<1x4x128xbf16>
    %54 = vector.shape_cast %53 : vector<1x4x128xbf16> to vector<4x128xbf16>
    %cst_30 = arith.constant dense<0.000000e+00> : vector<256x128xf32>
    %55 = tpu.matmul %52, %54, %cst_30 {dimension_numbers = #tpu.dot_dimension_numbers<[1], [0], [0], [1], [0, 0, 1, 1], [], []>} : vector<256x4xbf16>, vector<4x128xbf16>, vector<256x128xf32> -> vector<256x128xf32>
    %56 = arith.addf %50, %55 : vector<256x128xf32>
    %cst_31 = arith.constant dense<0.000000e+00> : vector<128xf32>
    %57 = vector.multi_reduction <add>, %56, %cst_31 [0] : vector<256x128xf32> to vector<128xf32>
    %58 = vector.shape_cast %57 : vector<128xf32> to vector<1x128xf32>
    %c0_32 = arith.constant 0 : index
    %c0_33 = arith.constant 0 : index
    %c0_34 = arith.constant 0 : index
    %59 = vector.load %arg4[%c0_32, %c0_33, %c0_34] : memref<1x8x128xf32, #tpu.memory_space<vmem>>, vector<1x1x128xf32>
    %60 = vector.shape_cast %59 : vector<1x1x128xf32> to vector<1x128xf32>
    %61 = vector.shape_cast %58 : vector<1x128xf32> to vector<1x1x128xf32>
    tpu.vector_store %arg4[%c0_32, %c0_33, %c0_34], %61 {strides = array<i32>} : memref<1x8x128xf32, #tpu.memory_space<vmem>>, vector<1x1x128xf32>,
    %62 = arith.mulf %56, %56 : vector<256x128xf32>
    %cst_35 = arith.constant dense<0.000000e+00> : vector<128xf32>
    %63 = vector.multi_reduction <add>, %62, %cst_35 [0] : vector<256x128xf32> to vector<128xf32>
    %64 = vector.shape_cast %63 : vector<128xf32> to vector<1x128xf32>
    %c0_36 = arith.constant 0 : index
    %c1_37 = arith.constant 1 : index
    %c0_38 = arith.constant 0 : index
    %65 = vector.load %arg4[%c0_36, %c1_37, %c0_38] : memref<1x8x128xf32, #tpu.memory_space<vmem>>, vector<1x1x128xf32>
    %66 = vector.shape_cast %65 : vector<1x1x128xf32> to vector<1x128xf32>
    %67 = vector.shape_cast %64 : vector<1x128xf32> to vector<1x1x128xf32>
    tpu.vector_store %arg4[%c0_36, %c1_37, %c0_38], %67 {strides = array<i32>} : memref<1x8x128xf32, #tpu.memory_space<vmem>>, vector<1x1x128xf32>,
    %68 = tpu.transpose %56, [1, 0] : vector<256x128xf32> -> vector<128x256xf32>
    %69 = vector.extract_strided_slice %68 {offsets = [0, 0], sizes = [8, 256], strides = [1, 1]} : vector<128x256xf32> to vector<8x256xf32>
    %c0_39 = arith.constant 0 : index
    %c0_40 = arith.constant 0 : index
    %c0_41 = arith.constant 0 : index
    %70 = vector.load %arg3[%c0_39, %c0_40, %c0_41] : memref<1x8x256xf32, #tpu.memory_space<vmem>>, vector<1x8x256xf32>
    %71 = vector.shape_cast %70 : vector<1x8x256xf32> to vector<8x256xf32>
    %72 = vector.shape_cast %69 : vector<8x256xf32> to vector<1x8x256xf32>
    tpu.vector_store %arg3[%c0_39, %c0_40, %c0_41], %72 {strides = array<i32>} : memref<1x8x256xf32, #tpu.memory_space<vmem>>, vector<1x8x256xf32>,
    return
  }
  func.func @transform_0(%arg0: i32) -> (i32, i32, i32, i32) {
    %c0_i32 = arith.constant 0 : i32
    %c0_i32_0 = arith.constant 0 : i32
    %c0_i32_1 = arith.constant 0 : i32
    %c0_i32_2 = arith.constant 0 : i32
    return %arg0, %c0_i32, %c0_i32_0, %c0_i32_1 : i32, i32, i32, i32
  }
  func.func @transform_1(%arg0: i32) -> (i32, i32, i32) {
    %c0_i32 = arith.constant 0 : i32
    %c0_i32_0 = arith.constant 0 : i32
    %c0_i32_1 = arith.constant 0 : i32
    %c0_i32_2 = arith.constant 0 : i32
    return %c0_i32, %c0_i32_0, %c0_i32_1 : i32, i32, i32
  }
  func.func @transform_2(%arg0: i32) -> (i32, i32, i32) {
    %c0_i32 = arith.constant 0 : i32
    %c0_i32_0 = arith.constant 0 : i32
    %c0_i32_1 = arith.constant 0 : i32
    return %arg0, %c0_i32, %c0_i32_0 : i32, i32, i32
  }
  func.func @transform_3(%arg0: i32) -> (i32, i32, i32) {
    %c0_i32 = arith.constant 0 : i32
    %c0_i32_0 = arith.constant 0 : i32
    %c0_i32_1 = arith.constant 0 : i32
    return %arg0, %c0_i32, %c0_i32_0 : i32, i32, i32
  }
}

module attributes {stable_mosaic.version = 11 : i64} {
  func.func @_gate_mlp_kernel(%arg0: i32, %arg1: memref<2x4xf32, #tpu.memory_space<vmem>>, %arg2: memref<4x10xf32, #tpu.memory_space<vmem>>, %arg3: memref<1x10xf32, #tpu.memory_space<vmem>>, %arg4: memref<10x8xf32, #tpu.memory_space<vmem>>, %arg5: memref<1x8xf32, #tpu.memory_space<vmem>>, %arg6: memref<2x8xf32, #tpu.memory_space<vmem>>) attributes {dimension_semantics = [#tpu.dimension_semantics<arbitrary>], iteration_bounds = array<i64: 1>, scalar_prefetch = 0 : i64, scratch_operands = 0 : i64, tpu.core_type = #tpu.core_type<tc>, window_params = [{pipeline_mode = #tpu.pipeline_mode<synchronous>, transform_indices = @transform_0, window_bounds = array<i64: 2, 4>}, {pipeline_mode = #tpu.pipeline_mode<synchronous>, transform_indices = @transform_1, window_bounds = array<i64: 4, 10>}, {pipeline_mode = #tpu.pipeline_mode<synchronous>, transform_indices = @transform_2, window_bounds = array<i64: 1, 10>}, {pipeline_mode = #tpu.pipeline_mode<synchronous>, transform_indices = @transform_3, window_bounds = array<i64: 10, 8>}, {pipeline_mode = #tpu.pipeline_mode<synchronous>, transform_indices = @transform_4, window_bounds = array<i64: 1, 8>}, {pipeline_mode = #tpu.pipeline_mode<synchronous>, transform_indices = @transform_5, window_bounds = array<i64: 2, 8>}]} {
    %c0 = arith.constant 0 : index
    %c0_0 = arith.constant 0 : index
    %0 = vector.load %arg1[%c0, %c0_0] : memref<2x4xf32, #tpu.memory_space<vmem>>, vector<2x4xf32>
    %c0_1 = arith.constant 0 : index
    %c0_2 = arith.constant 0 : index
    %1 = vector.load %arg2[%c0_1, %c0_2] : memref<4x10xf32, #tpu.memory_space<vmem>>, vector<4x10xf32>
    %cst = arith.constant dense<0.000000e+00> : vector<2x10xf32>
    %2 = tpu.matmul %0, %1, %cst {dimension_numbers = #tpu.dot_dimension_numbers<[1], [0], [0], [1], [0, 0, 1, 1], [], []>} : vector<2x4xf32>, vector<4x10xf32>, vector<2x10xf32> -> vector<2x10xf32>
    %c0_3 = arith.constant 0 : index
    %c0_4 = arith.constant 0 : index
    %3 = vector.load %arg3[%c0_3, %c0_4] : memref<1x10xf32, #tpu.memory_space<vmem>>, vector<1x10xf32>
    %4 = vector.broadcast %3 : vector<1x10xf32> to vector<2x10xf32>
    %5 = arith.addf %2, %4 : vector<2x10xf32>
    %cst_5 = arith.constant 0.000000e+00 : f32
    %6 = vector.broadcast %cst_5 : f32 to vector<2x10xf32>
    %7 = arith.maximumf %5, %6 : vector<2x10xf32>
    %c0_6 = arith.constant 0 : index
    %c0_7 = arith.constant 0 : index
    %8 = vector.load %arg4[%c0_6, %c0_7] : memref<10x8xf32, #tpu.memory_space<vmem>>, vector<10x8xf32>
    %cst_8 = arith.constant dense<0.000000e+00> : vector<2x8xf32>
    %9 = tpu.matmul %7, %8, %cst_8 {dimension_numbers = #tpu.dot_dimension_numbers<[1], [0], [0], [1], [0, 0, 1, 1], [], []>} : vector<2x10xf32>, vector<10x8xf32>, vector<2x8xf32> -> vector<2x8xf32>
    %c0_9 = arith.constant 0 : index
    %c0_10 = arith.constant 0 : index
    %10 = vector.load %arg5[%c0_9, %c0_10] : memref<1x8xf32, #tpu.memory_space<vmem>>, vector<1x8xf32>
    %11 = vector.broadcast %10 : vector<1x8xf32> to vector<2x8xf32>
    %12 = arith.addf %9, %11 : vector<2x8xf32>
    %13 = arith.negf %12 : vector<2x8xf32>
    %14 = math.exp %13 : vector<2x8xf32>
    %cst_11 = arith.constant 1.000000e+00 : f32
    %15 = vector.broadcast %cst_11 : f32 to vector<2x8xf32>
    %16 = arith.addf %15, %14 : vector<2x8xf32>
    %17 = arith.divf %15, %16 : vector<2x8xf32>
    %cst_12 = arith.constant 1.500000e+00 : f32
    %18 = vector.broadcast %cst_12 : f32 to vector<2x8xf32>
    %19 = arith.mulf %18, %17 : vector<2x8xf32>
    %c0_13 = arith.constant 0 : index
    %c0_14 = arith.constant 0 : index
    %20 = vector.load %arg6[%c0_13, %c0_14] : memref<2x8xf32, #tpu.memory_space<vmem>>, vector<2x8xf32>
    tpu.vector_store %arg6[%c0_13, %c0_14], %19 {strides = array<i32>} : memref<2x8xf32, #tpu.memory_space<vmem>>, vector<2x8xf32>,
    return
  }
  func.func @transform_0(%arg0: i32) -> (i32, i32) {
    %c0_i32 = arith.constant 0 : i32
    %c0_i32_0 = arith.constant 0 : i32
    %c0_i32_1 = arith.constant 0 : i32
    return %c0_i32, %c0_i32_0 : i32, i32
  }
  func.func @transform_1(%arg0: i32) -> (i32, i32) {
    %c0_i32 = arith.constant 0 : i32
    %c0_i32_0 = arith.constant 0 : i32
    %c0_i32_1 = arith.constant 0 : i32
    return %c0_i32, %c0_i32_0 : i32, i32
  }
  func.func @transform_2(%arg0: i32) -> (i32, i32) {
    %c0_i32 = arith.constant 0 : i32
    %c0_i32_0 = arith.constant 0 : i32
    %c0_i32_1 = arith.constant 0 : i32
    return %c0_i32, %c0_i32_0 : i32, i32
  }
  func.func @transform_3(%arg0: i32) -> (i32, i32) {
    %c0_i32 = arith.constant 0 : i32
    %c0_i32_0 = arith.constant 0 : i32
    %c0_i32_1 = arith.constant 0 : i32
    return %c0_i32, %c0_i32_0 : i32, i32
  }
  func.func @transform_4(%arg0: i32) -> (i32, i32) {
    %c0_i32 = arith.constant 0 : i32
    %c0_i32_0 = arith.constant 0 : i32
    %c0_i32_1 = arith.constant 0 : i32
    return %c0_i32, %c0_i32_0 : i32, i32
  }
  func.func @transform_5(%arg0: i32) -> (i32, i32) {
    %c0_i32 = arith.constant 0 : i32
    %c0_i32_0 = arith.constant 0 : i32
    %c0_i32_1 = arith.constant 0 : i32
    return %c0_i32, %c0_i32_0 : i32, i32
  }
}

module attributes {stable_mosaic.version = 11 : i64} {
  func.func @_bn_gate_kernel(%arg0: i32, %arg1: memref<1x8x256xf32, #tpu.memory_space<vmem>>, %arg2: memref<1x8x1xf32, #tpu.memory_space<vmem>>, %arg3: memref<1x8x1xf32, #tpu.memory_space<vmem>>, %arg4: memref<1x8x256xf32, #tpu.memory_space<vmem>>) attributes {dimension_semantics = [#tpu.dimension_semantics<parallel>], iteration_bounds = array<i64: 2>, scalar_prefetch = 0 : i64, scratch_operands = 0 : i64, tpu.core_type = #tpu.core_type<tc>, window_params = [{transform_indices = @transform_0, window_bounds = array<i64: 1, 8, 256>}, {transform_indices = @transform_1, window_bounds = array<i64: 1, 8, 1>}, {transform_indices = @transform_2, window_bounds = array<i64: 1, 8, 1>}, {transform_indices = @transform_3, window_bounds = array<i64: 1, 8, 256>}]} {
    %c0 = arith.constant 0 : index
    %c0_0 = arith.constant 0 : index
    %c0_1 = arith.constant 0 : index
    %0 = vector.load %arg1[%c0, %c0_0, %c0_1] : memref<1x8x256xf32, #tpu.memory_space<vmem>>, vector<1x8x256xf32>
    %c0_2 = arith.constant 0 : index
    %c0_3 = arith.constant 0 : index
    %c0_4 = arith.constant 0 : index
    %1 = vector.load %arg2[%c0_2, %c0_3, %c0_4] : memref<1x8x1xf32, #tpu.memory_space<vmem>>, vector<1x8x1xf32>
    %2 = vector.broadcast %1 : vector<1x8x1xf32> to vector<1x8x256xf32>
    %3 = arith.mulf %0, %2 : vector<1x8x256xf32>
    %c0_5 = arith.constant 0 : index
    %c0_6 = arith.constant 0 : index
    %c0_7 = arith.constant 0 : index
    %4 = vector.load %arg3[%c0_5, %c0_6, %c0_7] : memref<1x8x1xf32, #tpu.memory_space<vmem>>, vector<1x8x1xf32>
    %5 = vector.broadcast %4 : vector<1x8x1xf32> to vector<1x8x256xf32>
    %6 = arith.addf %3, %5 : vector<1x8x256xf32>
    %c0_8 = arith.constant 0 : index
    %c0_9 = arith.constant 0 : index
    %c0_10 = arith.constant 0 : index
    %7 = vector.load %arg4[%c0_8, %c0_9, %c0_10] : memref<1x8x256xf32, #tpu.memory_space<vmem>>, vector<1x8x256xf32>
    tpu.vector_store %arg4[%c0_8, %c0_9, %c0_10], %6 {strides = array<i32>} : memref<1x8x256xf32, #tpu.memory_space<vmem>>, vector<1x8x256xf32>,
    return
  }
  func.func @transform_0(%arg0: i32) -> (i32, i32, i32) {
    %c0_i32 = arith.constant 0 : i32
    %c0_i32_0 = arith.constant 0 : i32
    %c0_i32_1 = arith.constant 0 : i32
    return %arg0, %c0_i32, %c0_i32_0 : i32, i32, i32
  }
  func.func @transform_1(%arg0: i32) -> (i32, i32, i32) {
    %c0_i32 = arith.constant 0 : i32
    %c0_i32_0 = arith.constant 0 : i32
    %c0_i32_1 = arith.constant 0 : i32
    return %arg0, %c0_i32, %c0_i32_0 : i32, i32, i32
  }
  func.func @transform_2(%arg0: i32) -> (i32, i32, i32) {
    %c0_i32 = arith.constant 0 : i32
    %c0_i32_0 = arith.constant 0 : i32
    %c0_i32_1 = arith.constant 0 : i32
    return %arg0, %c0_i32, %c0_i32_0 : i32, i32, i32
  }
  func.func @transform_3(%arg0: i32) -> (i32, i32, i32) {
    %c0_i32 = arith.constant 0 : i32
    %c0_i32_0 = arith.constant 0 : i32
    %c0_i32_1 = arith.constant 0 : i32
    return %arg0, %c0_i32, %c0_i32_0 : i32, i32, i32
  }
}

</mosaic_0001>

<llo_original>
// kernel: neg.1
$region0: #{neg.1}
  #allocation0 [shape = 's32[1]{0}', space=sflag, size = 0x4, scoped, tag = 'scoped memory for neg.1']
  %s0 = inlined_call_operand.vmem [shape: f32[2,8], index: 0, kind: input, shape index: {}]
  %s1 = inlined_call_operand.vmem [shape: f32[2,8], index: 1, kind: output, shape index: {}]
  %v2 = vld [vmem:[%s0] sm:$0x3]
  %3 = xla_tuple %v2
  %4 = xla_tuple %3
  %v5 = vxor.u32 %v2, 2147483648
  %6 = xla_tuple %v5
  %7 = vst [vmem:[%s1] sm:$0x3] %v5

// kernel: gated_conv_bn_forward.4
$region0: #{gated_conv_bn_forward.4}
  #allocation0 [shape = 'u32[]', space=smem, size = 0x4, offset = 0x4, fixed_abs, tag = 'smem constant byte address 0x4 - core index']
  #allocation1 [shape = 'u32[72,128]{1,0:T(1,128)}', space=vmem, size = 0x9000, scoped, tag = 'internal scratch']
  %s0 = inlined_call_operand.vmem [shape: f32[8,256], index: 0, kind: input, shape index: {}]
  %s1 = inlined_call_operand.vmem [shape: f32[8,1], index: 1, kind: output, shape index: {}]
  %s2 = sld [smem:[#allocation0]]
  $region14: #{gated_conv_bn_forward.4} parent=0
    _
  %s4 = ssub.s32 1, %s2
  %s5 = scalar_select 0, %s4, %s2
  // Predicated region
  $region2: #{gated_conv_bn_forward.4} parent=0 // pred_check
    _
  $region3: #{gated_conv_bn_forward.4} parent=0 // pred_check_branch
    %7 = sbr.rel (0) target = $region5
  $region4: #{gated_conv_bn_forward.4} parent=0 // pred_region
    _
  $region5: #{gated_conv_bn_forward.4} parent=0 // pred_fallthru
    _
  %v8 = vld [vmem:[%s0] sm:$0xff]
  %v9 = vld [vmem:[%s0 + $0x8] sm:$0xff]
  %v10 = vand.u32 2147483647, %v8
  %v11 = vand.u32 2147483647, %v9
  %v12 = vadd.f32 %v10, %v11
  %13 = vadd.xlane.f32.xlu0 %v12
  %v14 = vpop.xlane.xlu0 %13
  %v15 = vrcp.pop 256.0
  %v16 = vmul.f32 256.0, %v15
  %v17 = vsub.f32 1.0, %v16
  %v18 = vmul.f32 %v15, %v17
  %v19 = vadd.f32 %v15, %v18
  %vm20 = vweird.f32 %v15
  %v21 = vsel %vm20, %v15, %v19
  %v22 = vmul.f32 %v14, %v21
  %vm23 = vcmask 7168
  %24 = vst.msk [vmem:[%s1] sm:$0xff] %vm23, %v22
  // Predicated region
  $region6: #{gated_conv_bn_forward.4} parent=0 // pred_check
    _
  $region7: #{gated_conv_bn_forward.4} parent=0 // pred_check_branch
    %26 = sbr.rel (0) target = $region9
  $region8: #{gated_conv_bn_forward.4} parent=0 // pred_region
    _
  $region9: #{gated_conv_bn_forward.4} parent=0 // pred_fallthru
    _
  // Predicated region
  $region10: #{gated_conv_bn_forward.4} parent=0 // pred_check
    _
  $region11: #{gated_conv_bn_forward.4} parent=0 // pred_check_branch
    %28 = sbr.rel (0) target = $region13
  $region12: #{gated_conv_bn_forward.4} parent=0 // pred_region
    _
  $region13: #{gated_conv_bn_forward.4} parent=0 // pred_fallthru
    _

// kernel: gated_conv_bn_forward.5
$region0: #{gated_conv_bn_forward.5}
  #allocation0 [shape = 'u32[]', space=smem, size = 0x4, offset = 0x4, fixed_abs, tag = 'smem constant byte address 0x4 - core index']
  #allocation1 [shape = 'u32[72,128]{1,0:T(1,128)}', space=vmem, size = 0x9000, scoped, tag = 'internal scratch']
  %s0 = inlined_call_operand.vmem [shape: f32[2,4], index: 0, kind: input, shape index: {}]
  %s1 = inlined_call_operand.vmem [shape: f32[4,10], index: 1, kind: input, shape index: {}]
  %s2 = inlined_call_operand.vmem [shape: f32[1,10], index: 2, kind: input, shape index: {}]
  %s3 = inlined_call_operand.vmem [shape: f32[10,8], index: 3, kind: input, shape index: {}]
  %s4 = inlined_call_operand.vmem [shape: f32[1,8], index: 4, kind: input, shape index: {}]
  %s5 = inlined_call_operand.vmem [shape: f32[2,8], index: 5, kind: output, shape index: {}]
  %s6 = sld [smem:[#allocation0]]
  $region30: #{gated_conv_bn_forward.5} parent=0
    _
  %s8 = ssub.s32 1, %s6
  %s9 = scalar_select 0, %s8, %s6
  // Predicated region
  $region2: #{gated_conv_bn_forward.5} parent=0 // pred_check
    _
  $region3: #{gated_conv_bn_forward.5} parent=0 // pred_check_branch
    %11 = sbr.rel (0) target = $region5
  $region4: #{gated_conv_bn_forward.5} parent=0 // pred_region
    _
  $region5: #{gated_conv_bn_forward.5} parent=0 // pred_fallthru
    _
  // Predicated region
  $region6: #{gated_conv_bn_forward.5} parent=0 // pred_check
    _
  $region7: #{gated_conv_bn_forward.5} parent=0 // pred_check_branch
    %13 = sbr.rel (0) target = $region9
  $region8: #{gated_conv_bn_forward.5} parent=0 // pred_region
    _
  $region9: #{gated_conv_bn_forward.5} parent=0 // pred_fallthru
    _
  // Predicated region
  $region10: #{gated_conv_bn_forward.5} parent=0 // pred_check
    _
  $region11: #{gated_conv_bn_forward.5} parent=0 // pred_check_branch
    %15 = sbr.rel (0) target = $region13
  $region12: #{gated_conv_bn_forward.5} parent=0 // pred_region
    _
  $region13: #{gated_conv_bn_forward.5} parent=0 // pred_fallthru
    _
  // Predicated region
  $region14: #{gated_conv_bn_forward.5} parent=0 // pred_check
    _
  $region15: #{gated_conv_bn_forward.5} parent=0 // pred_check_branch
    %17 = sbr.rel (0) target = $region17
  $region16: #{gated_conv_bn_forward.5} parent=0 // pred_region
    _
  $region17: #{gated_conv_bn_forward.5} parent=0 // pred_fallthru
    _
  // Predicated region
  $region18: #{gated_conv_bn_forward.5} parent=0 // pred_check
    _
  $region19: #{gated_conv_bn_forward.5} parent=0 // pred_check_branch
    %19 = sbr.rel (0) target = $region21
  $region20: #{gated_conv_bn_forward.5} parent=0 // pred_region
    _
  $region21: #{gated_conv_bn_forward.5} parent=0 // pred_fallthru
    _
  %v20 = vld [vmem:[%s0] sm:$0x3]
  %v21 = vld [vmem:[%s1] sm:$0xf]
  %v22 = vld [vmem:[%s2] sm:$0x1]
  %v24 = vperm.slane %v22, 0
  %vm26 = vcmask 31744
  %v28 = vsel %vm26, %v20, 0
  %vm30 = vcmask 1043456
  %v32 = vsel %vm30, %v21, 0
  %34 = vmatpush.msra.mxu0 0.0
  %35 = vmatpush.msra.mxu0 0.0
  %36 = vmatpush.msra.mxu0 0.0
  %37 = vmatpush.msra.mxu0 0.0
  %38 = vmatpush.msra.mxu0 0.0
  %39 = vmatpush.msra.mxu0 0.0
  %40 = vmatpush.msra.mxu0 0.0
  %41 = vmatpush.msra.mxu0 0.0
  %42 = vmatpush.msra.mxu0 0.0
  %43 = vmatpush.msra.mxu0 0.0
  %44 = vmatpush.msra.mxu0 0.0
  %45 = vmatpush.msra.mxu0 0.0
  %46 = vmatpush.msra.mxu0 0.0
  %47 = vmatpush.msra.mxu0 0.0
  %48 = vmatpush.msra.mxu0 0.0
  %49 = vmatpush.msra.mxu0 %v32
  %50 = vmatmul.f32.gmra.mxu0 %v28
  %v51 = vpop.f32.mrf.mxu0
  %v52 = vadd.f32 %v24, %v51
  %53 = vdwg.mxu0
  %v54 = vmax.f32 %v52, 0.0
  %v55 = vld [vmem:[%s3] sm:$0xff]
  %v56 = vld [vmem:[%s3 + $0x8] sm:$0x3]
  %v57 = vld [vmem:[%s4] sm:$0x1]
  %v59 = vperm.slane %v57, 0
  %vm61 = vcmask 80896
  %v63 = vsel %vm61, %v54, 0
  %vm65 = vcmask 1041408
  %v67 = vsel %vm65, %v56, 0
  %69 = vmatpush.msra.mxu0 0.0
  %70 = vmatpush.msra.mxu0 0.0
  %71 = vmatpush.msra.mxu0 0.0
  %72 = vmatpush.msra.mxu0 0.0
  %73 = vmatpush.msra.mxu0 0.0
  %74 = vmatpush.msra.mxu0 0.0
  %75 = vmatpush.msra.mxu0 0.0
  %76 = vmatpush.msra.mxu0 0.0
  %77 = vmatpush.msra.mxu0 0.0
  %78 = vmatpush.msra.mxu0 0.0
  %79 = vmatpush.msra.mxu0 0.0
  %80 = vmatpush.msra.mxu0 0.0
  %81 = vmatpush.msra.mxu0 0.0
  %82 = vmatpush.msra.mxu0 0.0
  %83 = vmatpush.msra.mxu0 %v67
  %84 = vmatpush.msra.mxu0 %v55
  %85 = vmatmul.f32.gmra.mxu0 %v63
  %v86 = vpop.f32.mrf.mxu0
  %v87 = vadd.f32 %v59, %v86
  %88 = vdwg.mxu0
  %v89 = vxor.u32 %v87, 2147483648
  %v90 = vmul.f32 %v89, 1.442695
  %v91 = vpow.pop %v90
  %v92 = vadd.f32 %v91, 1.0
  %v93 = vrcp.pop %v92
  %v94 = vmul.f32 %v92, %v93
  %v95 = vsub.f32 1.0, %v94
  %v96 = vmul.f32 %v93, %v95
  %v97 = vadd.f32 %v93, %v96
  %vm98 = vweird.f32 %v92
  %vm99 = vweird.f32 %v93
  %vm100 = vmor %vm98, %vm99
  %v101 = vsel %vm100, %v93, %v97
  %v102 = vand.u32 2147483647, %v92
  %vm103 = vcmp.eq.f32.partialorder %v102, 8.507059e+37
  %v104 = vand.u32 %v92, 2147483648
  %v105 = vor.u32 1.1754944e-38, %v104
  %v106 = vsel %vm103, %v105, %v101
  %v107 = vmul.f32 1.0, %v106
  %v108 = vmul.f32 %v107, 1.5
  %vm109 = vcmask 58368
  %110 = vst.msk [vmem:[%s5] sm:$0x3] %vm109, %v108
  // Predicated region
  $region22: #{gated_conv_bn_forward.5} parent=0 // pred_check
    _
  $region23: #{gated_conv_bn_forward.5} parent=0 // pred_check_branch
    %112 = sbr.rel (0) target = $region25
  $region24: #{gated_conv_bn_forward.5} parent=0 // pred_region
    _
  $region25: #{gated_conv_bn_forward.5} parent=0 // pred_fallthru
    _
  // Predicated region
  $region26: #{gated_conv_bn_forward.5} parent=0 // pred_check
    _
  $region27: #{gated_conv_bn_forward.5} parent=0 // pred_check_branch
    %114 = sbr.rel (0) target = $region29
  $region28: #{gated_conv_bn_forward.5} parent=0 // pred_region
    _
  $region29: #{gated_conv_bn_forward.5} parent=0 // pred_fallthru
    _

// kernel: gated_conv_bn_forward.7
$region0: #{gated_conv_bn_forward.7}
  #allocation0 [shape = 'u32[]', space=smem, size = 0x4, offset = 0x4, fixed_abs, tag = 'smem constant byte address 0x4 - core index']
  #allocation1 [shape = 'u32[72,128]{1,0:T(1,128)}', space=vmem, size = 0x9000, scoped, tag = 'internal scratch']
  %s0 = inlined_call_operand.vmem [shape: f32[2,8,256], index: 0, kind: input, shape index: {}]
  %s1 = inlined_call_operand.vmem [shape: f32[2,8,1], index: 1, kind: input, shape index: {}]
  %s2 = inlined_call_operand.vmem [shape: f32[2,8,1], index: 2, kind: input, shape index: {}]
  %s3 = inlined_call_operand.vmem [shape: f32[2,8,256], index: 3, kind: output, shape index: {}]
  %s4 = sld [smem:[#allocation0]]
  $region45: #{gated_conv_bn_forward.7} parent=0
    _
  %s6 = ssub.s32 1, %s4
  %s7 = scalar_select 0, %s6, %s4
  loop: start=0, step=1, limit=4
  $region2: #{gated_conv_bn_forward.7} parent=0 // loop_pre_header
    _
  $region3: #{gated_conv_bn_forward.7} parent=0 // loop_header
    %s9 = sphi 0, %s13
    %p10 = scmp.ge.s32.totalorder %s9, 4
    %s19 = sphi 0, %s21
    %s22 = sphi 0, %s19
    %s23 = sphi 0, %s22
    %s39 = sphi 0, %s23
    %s45 = sphi 0, %s47
    %s48 = sphi 0, %s45
    %s49 = sphi 0, %s48
    %s65 = sphi 0, %s49
    %s71 = sphi 0, %s73
    %s74 = sphi 0, %s71
    %s75 = sphi 0, %s74
    %s91 = sphi 0, %s75
    %s97 = sphi 0, %s99
    %s100 = sphi 0, %s97
    %s101 = sphi 0, %s100
    %s117 = sphi 0, %s101
  $region4: #{gated_conv_bn_forward.7} parent=0 // loop_header_branch
    %12 = sbr.rel (%p10) target = $region8
  $region5: #{gated_conv_bn_forward.7} parent=0 // loop_body
    %s14 = ssub.s32 %s9, 1
    %s15 = ssub.s32 %s9, 2
    %s16 = sadd.s32 %s9, 1
    %s17 = ssub.s32 %s9, %s16
    %p18 = scmp.eq.s32.totalorder %s17, 0
    %s20 = sadd.s32 %s19, 1
    %s21 = scalar_select %p18, %s19, %s20
    %p24 = pneg %p18
    %p25 = scmp.eq.s32.totalorder %s9, 1
    %p26 = por %p24, %p25
    %p27 = scmp.ne.s32.totalorder %s19, %s22
    %p28 = scmp.eq.s32.totalorder %s9, 0
    %p29 = por %p27, %p28
    %p30 = scmp.ne.s32.totalorder %s19, %s22
    %p31 = scmp.eq.s32.totalorder %s14, 1
    %p32 = por %p30, %p31
    %p33 = scmp.ne.s32.totalorder %s22, %s23
    %p34 = scmp.eq.s32.totalorder %s14, 0
    %p35 = por %p33, %p34
    %p36 = scmp.ne.s32.totalorder %s22, %s23
    %p37 = scmp.eq.s32.totalorder %s15, 1
    %p38 = por %p36, %p37
    %p40 = scmp.ne.s32.totalorder %s23, %s39
    %p41 = scmp.eq.s32.totalorder %s15, 0
    %p42 = por %p40, %p41
    %s43 = ssub.s32 %s9, %s16
    %p44 = scmp.eq.s32.totalorder %s43, 0
    %s46 = sadd.s32 %s45, 1
    %s47 = scalar_select %p44, %s45, %s46
    %p50 = pneg %p44
    %p51 = scmp.eq.s32.totalorder %s9, 1
    %p52 = por %p50, %p51
    %p53 = scmp.ne.s32.totalorder %s45, %s48
    %p54 = scmp.eq.s32.totalorder %s9, 0
    %p55 = por %p53, %p54
    %p56 = scmp.ne.s32.totalorder %s45, %s48
    %p57 = scmp.eq.s32.totalorder %s14, 1
    %p58 = por %p56, %p57
    %p59 = scmp.ne.s32.totalorder %s48, %s49
    %p60 = scmp.eq.s32.totalorder %s14, 0
    %p61 = por %p59, %p60
    %p62 = scmp.ne.s32.totalorder %s48, %s49
    %p63 = scmp.eq.s32.totalorder %s15, 1
    %p64 = por %p62, %p63
    %p66 = scmp.ne.s32.totalorder %s49, %s65
    %p67 = scmp.eq.s32.totalorder %s15, 0
    %p68 = por %p66, %p67
    %s69 = ssub.s32 %s9, %s16
    %p70 = scmp.eq.s32.totalorder %s69, 0
    %s72 = sadd.s32 %s71, 1
    %s73 = scalar_select %p70, %s71, %s72
    %p76 = pneg %p70
    %p77 = scmp.eq.s32.totalorder %s9, 1
    %p78 = por %p76, %p77
    %p79 = scmp.ne.s32.totalorder %s71, %s74
    %p80 = scmp.eq.s32.totalorder %s9, 0
    %p81 = por %p79, %p80
    %p82 = scmp.ne.s32.totalorder %s71, %s74
    %p83 = scmp.eq.s32.totalorder %s14, 1
    %p84 = por %p82, %p83
    %p85 = scmp.ne.s32.totalorder %s74, %s75
    %p86 = scmp.eq.s32.totalorder %s14, 0
    %p87 = por %p85, %p86
    %p88 = scmp.ne.s32.totalorder %s74, %s75
    %p89 = scmp.eq.s32.totalorder %s15, 1
    %p90 = por %p88, %p89
    %p92 = scmp.ne.s32.totalorder %s75, %s91
    %p93 = scmp.eq.s32.totalorder %s15, 0
    %p94 = por %p92, %p93
    %s95 = ssub.s32 %s9, %s16
    %p96 = scmp.eq.s32.totalorder %s95, 0
    %s98 = sadd.s32 %s97, 1
    %s99 = scalar_select %p96, %s97, %s98
    %p102 = pneg %p96
    %p103 = scmp.eq.s32.totalorder %s9, 1
    %p104 = por %p102, %p103
    %p105 = scmp.ne.s32.totalorder %s97, %s100
    %p106 = scmp.eq.s32.totalorder %s9, 0
    %p107 = por %p105, %p106
    %p108 = scmp.ne.s32.totalorder %s97, %s100
    %p109 = scmp.eq.s32.totalorder %s14, 1
    %p110 = por %p108, %p109
    %p111 = scmp.ne.s32.totalorder %s100, %s101
    %p112 = scmp.eq.s32.totalorder %s14, 0
    %p113 = por %p111, %p112
    %p114 = scmp.ne.s32.totalorder %s100, %s101
    %p115 = scmp.eq.s32.totalorder %s15, 1
    %p116 = por %p114, %p115
    %p118 = scmp.ne.s32.totalorder %s101, %s117
    %p119 = scmp.eq.s32.totalorder %s15, 0
    %p120 = por %p118, %p119
    %p121 = scmp.le.s32.totalorder 1, %s9
    %p122 = scmp.lt.s32.totalorder %s9, 3
    %p123 = pnand %p121, %p122
    %p124 = pneg %p123
    // Predicated region
    $region9: #{gated_conv_bn_forward.7} parent=5 // pred_check
      _
    $region10: #{gated_conv_bn_forward.7} parent=5 // pred_check_branch
      %126 = sbr.rel (%p123) target = $region12
    $region11: #{gated_conv_bn_forward.7} parent=5 // pred_region
      %s127 = ssub.s32 %s9, 1
    $region12: #{gated_conv_bn_forward.7} parent=5 // pred_fallthru
      _
    %p128 = scmp.lt.s32.totalorder %s9, 2
    // Predicated region
    $region13: #{gated_conv_bn_forward.7} parent=5 // pred_check
      %p129 = pneg %p128
    $region14: #{gated_conv_bn_forward.7} parent=5 // pred_check_branch
      %131 = sbr.rel (%p129) target = $region16
    $region15: #{gated_conv_bn_forward.7} parent=5 // pred_region
      // Predicated region
      $region17: #{gated_conv_bn_forward.7} parent=15 // pred_check
        %p132 = pneg %p29
      $region18: #{gated_conv_bn_forward.7} parent=15 // pred_check_branch
        %134 = sbr.rel (%p132) target = $region20
      $region19: #{gated_conv_bn_forward.7} parent=15 // pred_region
        %p135 = scmp.lt.s32.totalorder %s9, 1
        %s136 = scalar_select %p135, %s9, 1
        %s137 = smul.addr %s136, 2
        %s138 = smul.addr %s137, 8
        %s139 = scalar_lea.vmem %s0, %s138
      $region20: #{gated_conv_bn_forward.7} parent=15 // pred_fallthru
        _
      // Predicated region
      $region21: #{gated_conv_bn_forward.7} parent=15 // pred_check
        %p140 = pneg %p55
      $region22: #{gated_conv_bn_forward.7} parent=15 // pred_check_branch
        %142 = sbr.rel (%p140) target = $region24
      $region23: #{gated_conv_bn_forward.7} parent=15 // pred_region
        %p143 = scmp.lt.s32.totalorder %s9, 1
        %s144 = scalar_select %p143, %s9, 1
        %s145 = smul.addr %s144, 8
        %s146 = scalar_lea.vmem %s1, %s145
      $region24: #{gated_conv_bn_forward.7} parent=15 // pred_fallthru
        _
      // Predicated region
      $region25: #{gated_conv_bn_forward.7} parent=15 // pred_check
        %p147 = pneg %p81
      $region26: #{gated_conv_bn_forward.7} parent=15 // pred_check_branch
        %149 = sbr.rel (%p147) target = $region28
      $region27: #{gated_conv_bn_forward.7} parent=15 // pred_region
        %p150 = scmp.lt.s32.totalorder %s9, 1
        %s151 = scalar_select %p150, %s9, 1
        %s152 = smul.addr %s151, 8
        %s153 = scalar_lea.vmem %s2, %s152
      $region28: #{gated_conv_bn_forward.7} parent=15 // pred_fallthru
        _
    $region16: #{gated_conv_bn_forward.7} parent=5 // pred_fallthru
      _
    %p154 = scmp.le.s32.totalorder 1, %s9
    %p155 = scmp.lt.s32.totalorder %s9, 3
    %p156 = pnand %p154, %p155
    %p157 = pneg %p156
    // Predicated region
    $region29: #{gated_conv_bn_forward.7} parent=5 // pred_check
      _
    $region30: #{gated_conv_bn_forward.7} parent=5 // pred_check_branch
      %159 = sbr.rel (%p156) target = $region32
    $region31: #{gated_conv_bn_forward.7} parent=5 // pred_region
      %s160 = ssub.s32 %s9, 1
      %p161 = scmp.lt.s32.totalorder %s14, 1
      %s162 = scalar_select %p161, %s14, 1
      %s163 = smul.addr %s162, 2
      %s164 = smul.addr %s163, 8
      %s165 = scalar_lea.vmem %s0, %s164
      %p166 = pneg %p35
      %p167 = pneg %p32
      %p168 = scmp.lt.s32.totalorder %s14, 1
      %s169 = scalar_select %p168, %s14, 1
      %s170 = smul.addr %s169, 8
      %s171 = scalar_lea.vmem %s1, %s170
      %p172 = pneg %p61
      %p173 = pneg %p58
      %p174 = scmp.lt.s32.totalorder %s14, 1
      %s175 = scalar_select %p174, %s14, 1
      %s176 = smul.addr %s175, 8
      %s177 = scalar_lea.vmem %s2, %s176
      %p178 = pneg %p87
      %p179 = pneg %p84
      %p180 = pneg %p113
      %p181 = pneg %p110
      %p182 = scmp.lt.s32.totalorder %s14, 1
      %s183 = scalar_select %p182, %s14, 1
      %s184 = smul.addr %s183, 2
      %s185 = smul.addr %s184, 8
      %s186 = scalar_lea.vmem %s3, %s185
      %p187 = scmp.lt.s32.totalorder %s14, 1
      %s188 = scalar_select %p187, %s14, 1
      %s189 = smul.addr %s188, 2
      %s190 = smul.addr %s189, 8
      %s191 = scalar_lea.vmem %s0, %s190
      %p192 = scmp.lt.s32.totalorder %s14, 1
      %s193 = scalar_select %p192, %s14, 1
      %s194 = smul.addr %s193, 8
      %s195 = scalar_lea.vmem %s1, %s194
      %p196 = scmp.lt.s32.totalorder %s14, 1
      %s197 = scalar_select %p196, %s14, 1
      %s198 = smul.addr %s197, 8
      %s199 = scalar_lea.vmem %s2, %s198
      %p200 = scmp.lt.s32.totalorder %s14, 1
      %s201 = scalar_select %p200, %s14, 1
      %s202 = smul.addr %s201, 2
      %s203 = smul.addr %s202, 8
      %s204 = scalar_lea.vmem %s3, %s203
      %v205 = vld [vmem:[%s191] sm:$0xff]
      %v206 = vld [vmem:[%s191 + $0x8] sm:$0xff]
      %v207 = vld [vmem:[%s195] sm:$0xff]
      %209 = vset.pattern.permute.xlu0 0
      %210 = vperm.xlu0 %209, %v207
      %v211 = vpop.permute.xlu0 %210
      %v213 = vmul.f32 %v205, %v211
      %v214 = vmul.f32 %v206, %v211
      %v215 = vld [vmem:[%s199] sm:$0xff]
      %217 = vset.pattern.permute.xlu0 0
      %218 = vperm.xlu0 %217, %v215
      %v219 = vpop.permute.xlu0 %218
      %v221 = vadd.f32 %v213, %v219
      %v222 = vadd.f32 %v214, %v219
      %223 = vst [vmem:[%s204] sm:$0xff] %v221
      %224 = vst [vmem:[%s204 + $0x8] sm:$0xff] %v222
      %p225 = scmp.lt.s32.totalorder %s14, 1
      %s226 = scalar_select %p225, %s14, 1
      %s227 = smul.addr %s226, 2
      %s228 = smul.addr %s227, 8
      %s229 = scalar_lea.vmem %s3, %s228
      // Predicated region
      $region33: #{gated_conv_bn_forward.7} parent=31 // pred_check
        %p230 = pneg %p110
      $region34: #{gated_conv_bn_forward.7} parent=31 // pred_check_branch
        %232 = sbr.rel (%p230) target = $region36
      $region35: #{gated_conv_bn_forward.7} parent=31 // pred_region
        _
      $region36: #{gated_conv_bn_forward.7} parent=31 // pred_fallthru
        _
    $region32: #{gated_conv_bn_forward.7} parent=5 // pred_fallthru
      _
    %p233 = scmp.le.s32.totalorder 2, %s9
    // Predicated region
    $region37: #{gated_conv_bn_forward.7} parent=5 // pred_check
      %p234 = pneg %p233
    $region38: #{gated_conv_bn_forward.7} parent=5 // pred_check_branch
      %236 = sbr.rel (%p234) target = $region40
    $region39: #{gated_conv_bn_forward.7} parent=5 // pred_region
      %s237 = ssub.s32 %s9, 2
      // Predicated region
      $region41: #{gated_conv_bn_forward.7} parent=39 // pred_check
        %p238 = pneg %p116
      $region42: #{gated_conv_bn_forward.7} parent=39 // pred_check_branch
        %240 = sbr.rel (%p238) target = $region44
      $region43: #{gated_conv_bn_forward.7} parent=39 // pred_region
        %p241 = scmp.lt.s32.totalorder %s15, 1
        %s242 = scalar_select %p241, %s15, 1
        %s243 = smul.addr %s242, 2
        %s244 = smul.addr %s243, 8
        %s245 = scalar_lea.vmem %s3, %s244
      $region44: #{gated_conv_bn_forward.7} parent=39 // pred_fallthru
        _
    $region40: #{gated_conv_bn_forward.7} parent=5 // pred_fallthru
      _
  $region6: #{gated_conv_bn_forward.7} parent=0 // loop_footer
    %s13 = sadd.s32 1, %s9
  $region7: #{gated_conv_bn_forward.7} parent=0 // loop_footer_branch
    %8 = sbr.rel target = $region3
  $region8: #{gated_conv_bn_forward.7} parent=0 // loop_exit
    _

// kernel: gated_conv_bn_forward.6
$region0: #{gated_conv_bn_forward.6}
  #allocation0 [shape = 'u32[]', space=smem, size = 0x4, offset = 0x4, fixed_abs, tag = 'smem constant byte address 0x4 - core index']
  #allocation1 [shape = 'u32[72,128]{1,0:T(1,128)}', space=vmem, size = 0x9000, scoped, tag = 'internal scratch']
  %s0 = inlined_call_operand.vmem [shape: bf16[2,18,18,4], index: 0, kind: input, shape index: {}]
  %s1 = inlined_call_operand.vmem [shape: bf16[9,4,128], index: 1, kind: input, shape index: {}]
  %s2 = inlined_call_operand.vmem [shape: f32[2,8,256], index: 2, kind: output, shape index: {0}]
  %s3 = inlined_call_operand.vmem [shape: f32[2,8,128], index: 3, kind: output, shape index: {1}]
  %4 = xla_tuple %s2, %s3
  %s5 = sld [smem:[#allocation0]]
  $region49: #{gated_conv_bn_forward.6} parent=0
    _
  %s7 = ssub.s32 1, %s5
  %s8 = scalar_select 0, %s7, %s5
  loop: start=0, step=1, limit=4
  $region2: #{gated_conv_bn_forward.6} parent=0 // loop_pre_header
    _
  $region3: #{gated_conv_bn_forward.6} parent=0 // loop_header
    %s10 = sphi 0, %s14
    %p11 = scmp.ge.s32.totalorder %s10, 4
    %s20 = sphi 0, %s22
    %s23 = sphi 0, %s20
    %s24 = sphi 0, %s23
    %s40 = sphi 0, %s24
    %s44 = sphi 0, %s44
    %s46 = sphi 0, %s44
    %s47 = sphi 0, %s46
    %s61 = sphi 0, %s47
    %s67 = sphi 0, %s69
    %s70 = sphi 0, %s67
    %s71 = sphi 0, %s70
    %s87 = sphi 0, %s71
    %s93 = sphi 0, %s95
    %s96 = sphi 0, %s93
    %s97 = sphi 0, %s96
    %s113 = sphi 0, %s97
  $region4: #{gated_conv_bn_forward.6} parent=0 // loop_header_branch
    %13 = sbr.rel (%p11) target = $region8
  $region5: #{gated_conv_bn_forward.6} parent=0 // loop_body
    %s15 = ssub.s32 %s10, 1
    %s16 = ssub.s32 %s10, 2
    %s17 = sadd.s32 %s10, 1
    %s18 = ssub.s32 %s10, %s17
    %p19 = scmp.eq.s32.totalorder %s18, 0
    %s21 = sadd.s32 %s20, 1
    %s22 = scalar_select %p19, %s20, %s21
    %p25 = pneg %p19
    %p26 = scmp.eq.s32.totalorder %s10, 1
    %p27 = por %p25, %p26
    %p28 = scmp.ne.s32.totalorder %s20, %s23
    %p29 = scmp.eq.s32.totalorder %s10, 0
    %p30 = por %p28, %p29
    %p31 = scmp.ne.s32.totalorder %s20, %s23
    %p32 = scmp.eq.s32.totalorder %s15, 1
    %p33 = por %p31, %p32
    %p34 = scmp.ne.s32.totalorder %s23, %s24
    %p35 = scmp.eq.s32.totalorder %s15, 0
    %p36 = por %p34, %p35
    %p37 = scmp.ne.s32.totalorder %s23, %s24
    %p38 = scmp.eq.s32.totalorder %s16, 1
    %p39 = por %p37, %p38
    %p41 = scmp.ne.s32.totalorder %s24, %s40
    %p42 = scmp.eq.s32.totalorder %s16, 0
    %p43 = por %p41, %p42
    %s45 = sadd.s32 %s44, 1
    %p48 = scmp.eq.s32.totalorder %s10, 1
    %p49 = scmp.ne.s32.totalorder %s44, %s46
    %p50 = scmp.eq.s32.totalorder %s10, 0
    %p51 = por %p49, %p50
    %p52 = scmp.ne.s32.totalorder %s44, %s46
    %p53 = scmp.eq.s32.totalorder %s15, 1
    %p54 = por %p52, %p53
    %p55 = scmp.ne.s32.totalorder %s46, %s47
    %p56 = scmp.eq.s32.totalorder %s15, 0
    %p57 = por %p55, %p56
    %p58 = scmp.ne.s32.totalorder %s46, %s47
    %p59 = scmp.eq.s32.totalorder %s16, 1
    %p60 = por %p58, %p59
    %p62 = scmp.ne.s32.totalorder %s47, %s61
    %p63 = scmp.eq.s32.totalorder %s16, 0
    %p64 = por %p62, %p63
    %s65 = ssub.s32 %s10, %s17
    %p66 = scmp.eq.s32.totalorder %s65, 0
    %s68 = sadd.s32 %s67, 1
    %s69 = scalar_select %p66, %s67, %s68
    %p72 = pneg %p66
    %p73 = scmp.eq.s32.totalorder %s10, 1
    %p74 = por %p72, %p73
    %p75 = scmp.ne.s32.totalorder %s67, %s70
    %p76 = scmp.eq.s32.totalorder %s10, 0
    %p77 = por %p75, %p76
    %p78 = scmp.ne.s32.totalorder %s67, %s70
    %p79 = scmp.eq.s32.totalorder %s15, 1
    %p80 = por %p78, %p79
    %p81 = scmp.ne.s32.totalorder %s70, %s71
    %p82 = scmp.eq.s32.totalorder %s15, 0
    %p83 = por %p81, %p82
    %p84 = scmp.ne.s32.totalorder %s70, %s71
    %p85 = scmp.eq.s32.totalorder %s16, 1
    %p86 = por %p84, %p85
    %p88 = scmp.ne.s32.totalorder %s71, %s87
    %p89 = scmp.eq.s32.totalorder %s16, 0
    %p90 = por %p88, %p89
    %s91 = ssub.s32 %s10, %s17
    %p92 = scmp.eq.s32.totalorder %s91, 0
    %s94 = sadd.s32 %s93, 1
    %s95 = scalar_select %p92, %s93, %s94
    %p98 = pneg %p92
    %p99 = scmp.eq.s32.totalorder %s10, 1
    %p100 = por %p98, %p99
    %p101 = scmp.ne.s32.totalorder %s93, %s96
    %p102 = scmp.eq.s32.totalorder %s10, 0
    %p103 = por %p101, %p102
    %p104 = scmp.ne.s32.totalorder %s93, %s96
    %p105 = scmp.eq.s32.totalorder %s15, 1
    %p106 = por %p104, %p105
    %p107 = scmp.ne.s32.totalorder %s96, %s97
    %p108 = scmp.eq.s32.totalorder %s15, 0
    %p109 = por %p107, %p108
    %p110 = scmp.ne.s32.totalorder %s96, %s97
    %p111 = scmp.eq.s32.totalorder %s16, 1
    %p112 = por %p110, %p111
    %p114 = scmp.ne.s32.totalorder %s97, %s113
    %p115 = scmp.eq.s32.totalorder %s16, 0
    %p116 = por %p114, %p115
    %p117 = scmp.le.s32.totalorder 1, %s10
    %p118 = scmp.lt.s32.totalorder %s10, 3
    %p119 = pnand %p117, %p118
    %p120 = pneg %p119
    // Predicated region
    $region9: #{gated_conv_bn_forward.6} parent=5 // pred_check
      _
    $region10: #{gated_conv_bn_forward.6} parent=5 // pred_check_branch
      %122 = sbr.rel (%p119) target = $region12
    $region11: #{gated_conv_bn_forward.6} parent=5 // pred_region
      %s123 = ssub.s32 %s10, 1
      // Predicated region
      $region13: #{gated_conv_bn_forward.6} parent=11 // pred_check
        %p124 = pneg %p57
      $region14: #{gated_conv_bn_forward.6} parent=11 // pred_check_branch
        %126 = sbr.rel (%p124) target = $region16
      $region15: #{gated_conv_bn_forward.6} parent=11 // pred_region
        _
      $region16: #{gated_conv_bn_forward.6} parent=11 // pred_fallthru
        _
    $region12: #{gated_conv_bn_forward.6} parent=5 // pred_fallthru
      _
    %p127 = scmp.lt.s32.totalorder %s10, 2
    // Predicated region
    $region17: #{gated_conv_bn_forward.6} parent=5 // pred_check
      %p128 = pneg %p127
    $region18: #{gated_conv_bn_forward.6} parent=5 // pred_check_branch
      %130 = sbr.rel (%p128) target = $region20
    $region19: #{gated_conv_bn_forward.6} parent=5 // pred_region
      // Predicated region
      $region21: #{gated_conv_bn_forward.6} parent=19 // pred_check
        %p131 = pneg %p30
      $region22: #{gated_conv_bn_forward.6} parent=19 // pred_check_branch
        %133 = sbr.rel (%p131) target = $region24
      $region23: #{gated_conv_bn_forward.6} parent=19 // pred_region
        %p134 = scmp.lt.s32.totalorder %s10, 1
        %s135 = scalar_select %p134, %s10, 1
        %s136 = smul.addr %s135, 54
        %s137 = smul.addr %s136, 4
        %s138 = scalar_lea.vmem %s0, %s137
      $region24: #{gated_conv_bn_forward.6} parent=19 // pred_fallthru
        _
    $region20: #{gated_conv_bn_forward.6} parent=5 // pred_fallthru
      _
    %p139 = scmp.le.s32.totalorder 1, %s10
    %p140 = scmp.lt.s32.totalorder %s10, 3
    %p141 = pnand %p139, %p140
    %p142 = pneg %p141
    // Predicated region
    $region25: #{gated_conv_bn_forward.6} parent=5 // pred_check
      _
    $region26: #{gated_conv_bn_forward.6} parent=5 // pred_check_branch
      %144 = sbr.rel (%p141) target = $region28
    $region27: #{gated_conv_bn_forward.6} parent=5 // pred_region
      %s145 = ssub.s32 %s10, 1
      %p146 = scmp.lt.s32.totalorder %s15, 1
      %s147 = scalar_select %p146, %s15, 1
      %s148 = smul.addr %s147, 54
      %s149 = smul.addr %s148, 4
      %s150 = scalar_lea.vmem %s0, %s149
      %p151 = pneg %p36
      %p152 = pneg %p33
      %p153 = pneg %p57
      %p154 = pneg %p54
      %p155 = pneg %p83
      %p156 = pneg %p80
      %p157 = scmp.lt.s32.totalorder %s15, 1
      %s158 = scalar_select %p157, %s15, 1
      %s159 = smul.addr %s158, 2
      %s160 = smul.addr %s159, 8
      %s161 = scalar_lea.vmem %s2, %s160
      %p162 = pneg %p109
      %p163 = pneg %p106
      %p164 = scmp.lt.s32.totalorder %s15, 1
      %s165 = scalar_select %p164, %s15, 1
      %s166 = smul.addr %s165, 8
      %s167 = scalar_lea.vmem %s3, %s166
      %p168 = scmp.lt.s32.totalorder %s15, 1
      %s169 = scalar_select %p168, %s15, 1
      %s170 = smul.addr %s169, 54
      %s171 = smul.addr %s170, 4
      %s172 = scalar_lea.vmem %s0, %s171
      %p173 = scmp.lt.s32.totalorder %s15, 1
      %s174 = scalar_select %p173, %s15, 1
      %s175 = smul.addr %s174, 2
      %s176 = smul.addr %s175, 8
      %s177 = scalar_lea.vmem %s2, %s176
      %p178 = scmp.lt.s32.totalorder %s15, 1
      %s179 = scalar_select %p178, %s15, 1
      %s180 = smul.addr %s179, 8
      %s181 = scalar_lea.vmem %s3, %s180
      %v183 = vld [vmem:[%s172] sm:$0xf]
      %v184 = vld [vmem:[%s172 + $0x4] sm:$0xf]
      %v185 = vld [vmem:[%s172 + $0x8] sm:$0x1]
      %v186 = vld [vmem:[%s172 + $0xc] sm:$0xf]
      %v187 = vld [vmem:[%s172 + $0x10] sm:$0xf]
      %v188 = vld [vmem:[%s172 + $0x14] sm:$0x1]
      %v189 = vld [vmem:[%s172 + $0x18] sm:$0xf]
      %v190 = vld [vmem:[%s172 + $0x1c] sm:$0xf]
      %v191 = vld [vmem:[%s172 + $0x20] sm:$0x1]
      %v192 = vld [vmem:[%s172 + $0x24] sm:$0xf]
      %v193 = vld [vmem:[%s172 + $0x28] sm:$0xf]
      %v194 = vld [vmem:[%s172 + $0x2c] sm:$0x1]
      %v195 = vld [vmem:[%s172 + $0x30] sm:$0xf]
      %v196 = vld [vmem:[%s172 + $0x34] sm:$0xf]
      %v197 = vld [vmem:[%s172 + $0x38] sm:$0x1]
      %v198 = vld [vmem:[%s172 + $0x3c] sm:$0xf]
      %v199 = vld [vmem:[%s172 + $0x40] sm:$0xf]
      %v200 = vld [vmem:[%s172 + $0x44] sm:$0x1]
      %v201 = vld [vmem:[%s172 + $0x48] sm:$0xf]
      %v202 = vld [vmem:[%s172 + $0x4c] sm:$0xf]
      %v203 = vld [vmem:[%s172 + $0x50] sm:$0x1]
      %v204 = vld [vmem:[%s172 + $0x54] sm:$0xf]
      %v205 = vld [vmem:[%s172 + $0x58] sm:$0xf]
      %v206 = vld [vmem:[%s172 + $0x5c] sm:$0x1]
      %v207 = vld [vmem:[%s172 + $0x60] sm:$0xf]
      %v208 = vld [vmem:[%s172 + $0x64] sm:$0xf]
      %v209 = vld [vmem:[%s172 + $0x68] sm:$0x1]
      %v210 = vld [vmem:[%s172 + $0x6c] sm:$0xf]
      %v211 = vld [vmem:[%s172 + $0x70] sm:$0xf]
      %v212 = vld [vmem:[%s172 + $0x74] sm:$0x1]
      %v213 = vld [vmem:[%s172 + $0x78] sm:$0xf]
      %v214 = vld [vmem:[%s172 + $0x7c] sm:$0xf]
      %v215 = vld [vmem:[%s172 + $0x80] sm:$0x1]
      %v216 = vld [vmem:[%s172 + $0x84] sm:$0xf]
      %v217 = vld [vmem:[%s172 + $0x88] sm:$0xf]
      %v218 = vld [vmem:[%s172 + $0x8c] sm:$0x1]
      %v219 = vld [vmem:[%s172 + $0x90] sm:$0xf]
      %v220 = vld [vmem:[%s172 + $0x94] sm:$0xf]
      %v221 = vld [vmem:[%s172 + $0x98] sm:$0x1]
      %v222 = vld [vmem:[%s172 + $0x9c] sm:$0xf]
      %v223 = vld [vmem:[%s172 + $0xa0] sm:$0xf]
      %v224 = vld [vmem:[%s172 + $0xa4] sm:$0x1]
      %v225 = vld [vmem:[%s172 + $0xa8] sm:$0xf]
      %v226 = vld [vmem:[%s172 + $0xac] sm:$0xf]
      %v227 = vld [vmem:[%s172 + $0xb0] sm:$0x1]
      %v228 = vld [vmem:[%s172 + $0xb4] sm:$0xf]
      %v229 = vld [vmem:[%s172 + $0xb8] sm:$0xf]
      %v230 = vld [vmem:[%s172 + $0xbc] sm:$0x1]
      %v231 = vld [vmem:[%s172 + $0xc0] sm:$0xf]
      %v232 = vld [vmem:[%s172 + $0xc4] sm:$0xf]
      %v233 = vld [vmem:[%s172 + $0xc8] sm:$0x1]
      %v234 = vld [vmem:[%s172 + $0xcc] sm:$0xf]
      %v235 = vld [vmem:[%s172 + $0xd0] sm:$0xf]
      %v236 = vld [vmem:[%s172 + $0xd4] sm:$0x1]
      %v237 = vld [vmem:[%s1] sm:$0x3]
      %vm238 = vsmask.f32 3328
      %vm239 = vsmask.f32 7440
      %vm240 = vmor %vm238, %vm239
      %v242 = vshrl.u32 %v183, 16
      %v244 = vrot.slane %v242, 4
      %v245 = vshll.u32 %v183, 16
      %v247 = vrot.slane %v245, 5
      %v248 = vor.u32 %v244, %v247
      %v249 = vrot.slane %v248, 4
      %v251 = vshll.u32 %v184, 16
      %v253 = vrot.slane %v251, 5
      %v254 = vsel %vm240, %v249, %v253
      %v255 = vshrl.u32 %v184, 16
      %v257 = vrot.slane %v255, 4
      %v258 = vor.u32 %v257, %v253
      %v259 = vrot.slane %v258, 4
      %v261 = vshll.u32 %v185, 16
      %v263 = vrot.slane %v261, 5
      %v264 = vsel %vm240, %v259, %v263
      %v266 = vshrl.u32 %v186, 16
      %v268 = vrot.slane %v266, 4
      %v269 = vshll.u32 %v186, 16
      %v271 = vrot.slane %v269, 5
      %v272 = vor.u32 %v268, %v271
      %v273 = vrot.slane %v272, 4
      %v275 = vshll.u32 %v187, 16
      %v277 = vrot.slane %v275, 5
      %v278 = vsel %vm240, %v273, %v277
      %v279 = vshrl.u32 %v187, 16
      %v281 = vrot.slane %v279, 4
      %v282 = vor.u32 %v281, %v277
      %v283 = vrot.slane %v282, 4
      %v285 = vshll.u32 %v188, 16
      %v287 = vrot.slane %v285, 5
      %v288 = vsel %vm240, %v283, %v287
      %v290 = vshrl.u32 %v189, 16
      %v292 = vrot.slane %v290, 4
      %v293 = vshll.u32 %v189, 16
      %v295 = vrot.slane %v293, 5
      %v296 = vor.u32 %v292, %v295
      %v297 = vrot.slane %v296, 4
      %v299 = vshll.u32 %v190, 16
      %v301 = vrot.slane %v299, 5
      %v302 = vsel %vm240, %v297, %v301
      %v303 = vshrl.u32 %v190, 16
      %v305 = vrot.slane %v303, 4
      %v306 = vor.u32 %v305, %v301
      %v307 = vrot.slane %v306, 4
      %v309 = vshll.u32 %v191, 16
      %v311 = vrot.slane %v309, 5
      %v312 = vsel %vm240, %v307, %v311
      %v314 = vshrl.u32 %v192, 16
      %v316 = vrot.slane %v314, 4
      %v317 = vshll.u32 %v192, 16
      %v319 = vrot.slane %v317, 5
      %v320 = vor.u32 %v316, %v319
      %v321 = vrot.slane %v320, 4
      %v323 = vshll.u32 %v193, 16
      %v325 = vrot.slane %v323, 5
      %v326 = vsel %vm240, %v321, %v325
      %v327 = vshrl.u32 %v193, 16
      %v329 = vrot.slane %v327, 4
      %v330 = vor.u32 %v329, %v325
      %v331 = vrot.slane %v330, 4
      %v333 = vshll.u32 %v194, 16
      %v335 = vrot.slane %v333, 5
      %v336 = vsel %vm240, %v331, %v335
      %v338 = vshrl.u32 %v195, 16
      %v340 = vrot.slane %v338, 4
      %v341 = vshll.u32 %v195, 16
      %v343 = vrot.slane %v341, 5
      %v344 = vor.u32 %v340, %v343
      %v345 = vrot.slane %v344, 4
      %v347 = vshll.u32 %v196, 16
      %v349 = vrot.slane %v347, 5
      %v350 = vsel %vm240, %v345, %v349
      %v351 = vshrl.u32 %v196, 16
      %v353 = vrot.slane %v351, 4
      %v354 = vor.u32 %v353, %v349
      %v355 = vrot.slane %v354, 4
      %v357 = vshll.u32 %v197, 16
      %v359 = vrot.slane %v357, 5
      %v360 = vsel %vm240, %v355, %v359
      %v362 = vshrl.u32 %v198, 16
      %v364 = vrot.slane %v362, 4
      %v365 = vshll.u32 %v198, 16
      %v367 = vrot.slane %v365, 5
      %v368 = vor.u32 %v364, %v367
      %v369 = vrot.slane %v368, 4
      %v371 = vshll.u32 %v199, 16
      %v373 = vrot.slane %v371, 5
      %v374 = vsel %vm240, %v369, %v373
      %v375 = vshrl.u32 %v199, 16
      %v377 = vrot.slane %v375, 4
      %v378 = vor.u32 %v377, %v373
      %v379 = vrot.slane %v378, 4
      %v381 = vshll.u32 %v200, 16
      %v383 = vrot.slane %v381, 5
      %v384 = vsel %vm240, %v379, %v383
      %v386 = vshrl.u32 %v201, 16
      %v388 = vrot.slane %v386, 4
      %v389 = vshll.u32 %v201, 16
      %v391 = vrot.slane %v389, 5
      %v392 = vor.u32 %v388, %v391
      %v393 = vrot.slane %v392, 4
      %v395 = vshll.u32 %v202, 16
      %v397 = vrot.slane %v395, 5
      %v398 = vsel %vm240, %v393, %v397
      %v399 = vshrl.u32 %v202, 16
      %v401 = vrot.slane %v399, 4
      %v402 = vor.u32 %v401, %v397
      %v403 = vrot.slane %v402, 4
      %v405 = vshll.u32 %v203, 16
      %v407 = vrot.slane %v405, 5
      %v408 = vsel %vm240, %v403, %v407
      %v410 = vshrl.u32 %v204, 16
      %v412 = vrot.slane %v410, 4
      %v413 = vshll.u32 %v204, 16
      %v415 = vrot.slane %v413, 5
      %v416 = vor.u32 %v412, %v415
      %v417 = vrot.slane %v416, 4
      %v419 = vshll.u32 %v205, 16
      %v421 = vrot.slane %v419, 5
      %v422 = vsel %vm240, %v417, %v421
      %v423 = vshrl.u32 %v205, 16
      %v425 = vrot.slane %v423, 4
      %v426 = vor.u32 %v425, %v421
      %v427 = vrot.slane %v426, 4
      %v429 = vshll.u32 %v206, 16
      %v431 = vrot.slane %v429, 5
      %v432 = vsel %vm240, %v427, %v431
      %v434 = vshrl.u32 %v207, 16
      %v436 = vrot.slane %v434, 4
      %v437 = vshll.u32 %v207, 16
      %v439 = vrot.slane %v437, 5
      %v440 = vor.u32 %v436, %v439
      %v441 = vrot.slane %v440, 4
      %v443 = vshll.u32 %v208, 16
      %v445 = vrot.slane %v443, 5
      %v446 = vsel %vm240, %v441, %v445
      %v447 = vshrl.u32 %v208, 16
      %v449 = vrot.slane %v447, 4
      %v450 = vor.u32 %v449, %v445
      %v451 = vrot.slane %v450, 4
      %v453 = vshll.u32 %v209, 16
      %v455 = vrot.slane %v453, 5
      %v456 = vsel %vm240, %v451, %v455
      %v458 = vshrl.u32 %v210, 16
      %v460 = vrot.slane %v458, 4
      %v461 = vshll.u32 %v210, 16
      %v463 = vrot.slane %v461, 5
      %v464 = vor.u32 %v460, %v463
      %v465 = vrot.slane %v464, 4
      %v467 = vshll.u32 %v211, 16
      %v469 = vrot.slane %v467, 5
      %v470 = vsel %vm240, %v465, %v469
      %v471 = vshrl.u32 %v211, 16
      %v473 = vrot.slane %v471, 4
      %v474 = vor.u32 %v473, %v469
      %v475 = vrot.slane %v474, 4
      %v477 = vshll.u32 %v212, 16
      %v479 = vrot.slane %v477, 5
      %v480 = vsel %vm240, %v475, %v479
      %v482 = vshrl.u32 %v213, 16
      %v484 = vrot.slane %v482, 4
      %v485 = vshll.u32 %v213, 16
      %v487 = vrot.slane %v485, 5
      %v488 = vor.u32 %v484, %v487
      %v489 = vrot.slane %v488, 4
      %v491 = vshll.u32 %v214, 16
      %v493 = vrot.slane %v491, 5
      %v494 = vsel %vm240, %v489, %v493
      %v495 = vshrl.u32 %v214, 16
      %v497 = vrot.slane %v495, 4
      %v498 = vor.u32 %v497, %v493
      %v499 = vrot.slane %v498, 4
      %v501 = vshll.u32 %v215, 16
      %v503 = vrot.slane %v501, 5
      %v504 = vsel %vm240, %v499, %v503
      %v506 = vshrl.u32 %v216, 16
      %v508 = vrot.slane %v506, 4
      %v509 = vshll.u32 %v216, 16
      %v511 = vrot.slane %v509, 5
      %v512 = vor.u32 %v508, %v511
      %v513 = vrot.slane %v512, 4
      %v515 = vshll.u32 %v217, 16
      %v517 = vrot.slane %v515, 5
      %v518 = vsel %vm240, %v513, %v517
      %v519 = vshrl.u32 %v217, 16
      %v521 = vrot.slane %v519, 4
      %v522 = vor.u32 %v521, %v517
      %v523 = vrot.slane %v522, 4
      %v525 = vshll.u32 %v218, 16
      %v527 = vrot.slane %v525, 5
      %v528 = vsel %vm240, %v523, %v527
      %v530 = vshrl.u32 %v219, 16
      %v532 = vrot.slane %v530, 4
      %v533 = vshll.u32 %v219, 16
      %v535 = vrot.slane %v533, 5
      %v536 = vor.u32 %v532, %v535
      %v537 = vrot.slane %v536, 4
      %v539 = vshll.u32 %v220, 16
      %v541 = vrot.slane %v539, 5
      %v542 = vsel %vm240, %v537, %v541
      %v543 = vshrl.u32 %v220, 16
      %v545 = vrot.slane %v543, 4
      %v546 = vor.u32 %v545, %v541
      %v547 = vrot.slane %v546, 4
      %v549 = vshll.u32 %v221, 16
      %v551 = vrot.slane %v549, 5
      %v552 = vsel %vm240, %v547, %v551
      %v554 = vshrl.u32 %v222, 16
      %v556 = vrot.slane %v554, 4
      %v557 = vshll.u32 %v222, 16
      %v559 = vrot.slane %v557, 5
      %v560 = vor.u32 %v556, %v559
      %v561 = vrot.slane %v560, 4
      %v563 = vshll.u32 %v223, 16
      %v565 = vrot.slane %v563, 5
      %v566 = vsel %vm240, %v561, %v565
      %v567 = vshrl.u32 %v223, 16
      %v569 = vrot.slane %v567, 4
      %v570 = vor.u32 %v569, %v565
      %v571 = vrot.slane %v570, 4
      %v573 = vshll.u32 %v224, 16
      %v575 = vrot.slane %v573, 5
      %v576 = vsel %vm240, %v571, %v575
      %v578 = vshrl.u32 %v225, 16
      %v580 = vrot.slane %v578, 4
      %v581 = vshll.u32 %v225, 16
      %v583 = vrot.slane %v581, 5
      %v584 = vor.u32 %v580, %v583
      %v585 = vrot.slane %v584, 4
      %v587 = vshll.u32 %v226, 16
      %v589 = vrot.slane %v587, 5
      %v590 = vsel %vm240, %v585, %v589
      %v591 = vshrl.u32 %v226, 16
      %v593 = vrot.slane %v591, 4
      %v594 = vor.u32 %v593, %v589
      %v595 = vrot.slane %v594, 4
      %v597 = vshll.u32 %v227, 16
      %v599 = vrot.slane %v597, 5
      %v600 = vsel %vm240, %v595, %v599
      %v602 = vshrl.u32 %v228, 16
      %v604 = vrot.slane %v602, 4
      %v605 = vshll.u32 %v228, 16
      %v607 = vrot.slane %v605, 5
      %v608 = vor.u32 %v604, %v607
      %v609 = vrot.slane %v608, 4
      %v611 = vshll.u32 %v229, 16
      %v613 = vrot.slane %v611, 5
      %v614 = vsel %vm240, %v609, %v613
      %v615 = vshrl.u32 %v229, 16
      %v617 = vrot.slane %v615, 4
      %v618 = vor.u32 %v617, %v613
      %v619 = vrot.slane %v618, 4
      %v621 = vshll.u32 %v230, 16
      %v623 = vrot.slane %v621, 5
      %v624 = vsel %vm240, %v619, %v623
      %s625 = scalar_lea.vmem %s1, 2
      %v626 = vld [vmem:[%s625] sm:$0x3]
      %v627 = vunpack.c.l.b16 %v254
      %v628 = vunpack.c.l.b16 %v264
      %v629 = vunpack.c.l.b16 %v278
      %v630 = vunpack.c.l.b16 %v288
      %v631 = vunpack.c.l.b16 %v302
      %v632 = vunpack.c.l.b16 %v312
      %v633 = vunpack.c.l.b16 %v326
      %v634 = vunpack.c.l.b16 %v336
      %v635 = vunpack.c.l.b16 %v350
      %v636 = vunpack.c.l.b16 %v360
      %v637 = vunpack.c.l.b16 %v374
      %v638 = vunpack.c.l.b16 %v384
      %v639 = vunpack.c.l.b16 %v398
      %v640 = vunpack.c.l.b16 %v408
      %v641 = vunpack.c.l.b16 %v422
      %v642 = vunpack.c.l.b16 %v432
      %v643 = vunpack.c.l.b16 %v446
      %v644 = vunpack.c.l.b16 %v456
      %v645 = vunpack.c.l.b16 %v470
      %v646 = vunpack.c.l.b16 %v480
      %v647 = vunpack.c.l.b16 %v494
      %v648 = vunpack.c.l.b16 %v504
      %v649 = vunpack.c.l.b16 %v518
      %v650 = vunpack.c.l.b16 %v528
      %v651 = vunpack.c.l.b16 %v542
      %v652 = vunpack.c.l.b16 %v552
      %v653 = vunpack.c.l.b16 %v566
      %v654 = vunpack.c.l.b16 %v576
      %v655 = vunpack.c.l.b16 %v590
      %v656 = vunpack.c.l.b16 %v600
      %v657 = vunpack.c.l.b16 %v614
      %v658 = vunpack.c.l.b16 %v624
      %v659 = vpack.c.b16 %v628, %v627
      %v660 = vpack.c.b16 %v630, %v629
      %v661 = vpack.c.b16 %v632, %v631
      %v662 = vpack.c.b16 %v634, %v633
      %v663 = vpack.c.b16 %v636, %v635
      %v664 = vpack.c.b16 %v638, %v637
      %v665 = vpack.c.b16 %v640, %v639
      %v666 = vpack.c.b16 %v642, %v641
      %v667 = vpack.c.b16 %v644, %v643
      %v668 = vpack.c.b16 %v646, %v645
      %v669 = vpack.c.b16 %v648, %v647
      %v670 = vpack.c.b16 %v650, %v649
      %v671 = vpack.c.b16 %v652, %v651
      %v672 = vpack.c.b16 %v654, %v653
      %v673 = vpack.c.b16 %v656, %v655
      %v674 = vpack.c.b16 %v658, %v657
      %vm675 = vcmask 31744
      %v677 = vsel %vm675, %v659, 0
      %v680 = vsel %vm675, %v660, 0
      %v683 = vsel %vm675, %v661, 0
      %v686 = vsel %vm675, %v662, 0
      %v689 = vsel %vm675, %v663, 0
      %v692 = vsel %vm675, %v664, 0
      %v695 = vsel %vm675, %v665, 0
      %v698 = vsel %vm675, %v666, 0
      %v701 = vsel %vm675, %v667, 0
      %v704 = vsel %vm675, %v668, 0
      %v707 = vsel %vm675, %v669, 0
      %v710 = vsel %vm675, %v670, 0
      %v713 = vsel %vm675, %v671, 0
      %v716 = vsel %vm675, %v672, 0
      %v719 = vsel %vm675, %v673, 0
      %v722 = vsel %vm675, %v674, 0
      %vm724 = vcmask 1041408
      %v726 = vsel %vm724, %v626, 0
      %728 = vmatpush.bf16.msra.mxu0 0
      %729 = vmatpush.bf16.msra.mxu0 0
      %730 = vmatpush.bf16.msra.mxu0 0
      %731 = vmatpush.bf16.msra.mxu0 0
      %732 = vmatpush.bf16.msra.mxu0 0
      %733 = vmatpush.bf16.msra.mxu0 0
      %734 = vmatpush.bf16.msra.mxu0 0
      %735 = vmatpush.bf16.msra.mxu0 %v726
      %736 = vmatmul.bf16.gmra.mxu0 %v677
      %v737 = vpop.f32.mrf.mxu0
      %v738 = vadd.f32 0.0, %v737
      %v739 = vpop.f32.mrf.mxu0
      %v740 = vadd.f32 0.0, %v739
      %741 = vmatmul.bf16.gmra.mxu0 %v680
      %v742 = vpop.f32.mrf.mxu0
      %v743 = vadd.f32 0.0, %v742
      %v744 = vpop.f32.mrf.mxu0
      %v745 = vadd.f32 0.0, %v744
      %746 = vmatmul.bf16.gmra.mxu0 %v683
      %v747 = vpop.f32.mrf.mxu0
      %v748 = vadd.f32 0.0, %v747
      %v749 = vpop.f32.mrf.mxu0
      %v750 = vadd.f32 0.0, %v749
      %751 = vmatmul.bf16.gmra.mxu0 %v686
      %v752 = vpop.f32.mrf.mxu0
      %v753 = vadd.f32 0.0, %v752
      %v754 = vpop.f32.mrf.mxu0
      %v755 = vadd.f32 0.0, %v754
      %756 = vmatmul.bf16.gmra.mxu0 %v689
      %v757 = vpop.f32.mrf.mxu0
      %v758 = vadd.f32 0.0, %v757
      %v759 = vpop.f32.mrf.mxu0
      %v760 = vadd.f32 0.0, %v759
      %761 = vmatmul.bf16.gmra.mxu0 %v692
      %v762 = vpop.f32.mrf.mxu0
      %v763 = vadd.f32 0.0, %v762
      %v764 = vpop.f32.mrf.mxu0
      %v765 = vadd.f32 0.0, %v764
      %766 = vmatmul.bf16.gmra.mxu0 %v695
      %v767 = vpop.f32.mrf.mxu0
      %v768 = vadd.f32 0.0, %v767
      %v769 = vpop.f32.mrf.mxu0
      %v770 = vadd.f32 0.0, %v769
      %771 = vmatmul.bf16.gmra.mxu0 %v698
      %v772 = vpop.f32.mrf.mxu0
      %v773 = vadd.f32 0.0, %v772
      %v774 = vpop.f32.mrf.mxu0
      %v775 = vadd.f32 0.0, %v774
      %776 = vmatmul.bf16.gmra.mxu0 %v701
      %v777 = vpop.f32.mrf.mxu0
      %v778 = vadd.f32 0.0, %v777
      %v779 = vpop.f32.mrf.mxu0
      %v780 = vadd.f32 0.0, %v779
      %781 = vmatmul.bf16.gmra.mxu0 %v704
      %v782 = vpop.f32.mrf.mxu0
      %v783 = vadd.f32 0.0, %v782
      %v784 = vpop.f32.mrf.mxu0
      %v785 = vadd.f32 0.0, %v784
      %786 = vmatmul.bf16.gmra.mxu0 %v707
      %v787 = vpop.f32.mrf.mxu0
      %v788 = vadd.f32 0.0, %v787
      %v789 = vpop.f32.mrf.mxu0
      %v790 = vadd.f32 0.0, %v789
      %791 = vmatmul.bf16.gmra.mxu0 %v710
      %v792 = vpop.f32.mrf.mxu0
      %v793 = vadd.f32 0.0, %v792
      %v794 = vpop.f32.mrf.mxu0
      %v795 = vadd.f32 0.0, %v794
      %796 = vmatmul.bf16.gmra.mxu0 %v713
      %v797 = vpop.f32.mrf.mxu0
      %v798 = vadd.f32 0.0, %v797
      %v799 = vpop.f32.mrf.mxu0
      %v800 = vadd.f32 0.0, %v799
      %801 = vmatmul.bf16.gmra.mxu0 %v716
      %v802 = vpop.f32.mrf.mxu0
      %v803 = vadd.f32 0.0, %v802
      %v804 = vpop.f32.mrf.mxu0
      %v805 = vadd.f32 0.0, %v804
      %806 = vmatmul.bf16.gmra.mxu0 %v719
      %v807 = vpop.f32.mrf.mxu0
      %v808 = vadd.f32 0.0, %v807
      %v809 = vpop.f32.mrf.mxu0
      %v810 = vadd.f32 0.0, %v809
      %811 = vmatmul.bf16.gmra.mxu0 %v722
      %v812 = vpop.f32.mrf.mxu0
      %v813 = vadd.f32 0.0, %v812
      %v814 = vpop.f32.mrf.mxu0
      %v815 = vadd.f32 0.0, %v814
      %816 = vdwg.mxu0
      %v849 = vunpack.c.l.b16 %v183
      %v850 = vunpack.c.l.b16 %v184
      %v851 = vunpack.c.l.b16 %v186
      %v852 = vunpack.c.l.b16 %v187
      %v853 = vunpack.c.l.b16 %v189
      %v854 = vunpack.c.l.b16 %v190
      %v855 = vunpack.c.l.b16 %v192
      %v856 = vunpack.c.l.b16 %v193
      %v857 = vunpack.c.l.b16 %v195
      %v858 = vunpack.c.l.b16 %v196
      %v859 = vunpack.c.l.b16 %v198
      %v860 = vunpack.c.l.b16 %v199
      %v861 = vunpack.c.l.b16 %v201
      %v862 = vunpack.c.l.b16 %v202
      %v863 = vunpack.c.l.b16 %v204
      %v864 = vunpack.c.l.b16 %v205
      %v865 = vunpack.c.l.b16 %v207
      %v866 = vunpack.c.l.b16 %v208
      %v867 = vunpack.c.l.b16 %v210
      %v868 = vunpack.c.l.b16 %v211
      %v869 = vunpack.c.l.b16 %v213
      %v870 = vunpack.c.l.b16 %v214
      %v871 = vunpack.c.l.b16 %v216
      %v872 = vunpack.c.l.b16 %v217
      %v873 = vunpack.c.l.b16 %v219
      %v874 = vunpack.c.l.b16 %v220
      %v875 = vunpack.c.l.b16 %v222
      %v876 = vunpack.c.l.b16 %v223
      %v877 = vunpack.c.l.b16 %v225
      %v878 = vunpack.c.l.b16 %v226
      %v879 = vunpack.c.l.b16 %v228
      %v880 = vunpack.c.l.b16 %v229
      %v881 = vpack.c.b16 %v850, %v849
      %v882 = vpack.c.b16 %v852, %v851
      %v883 = vpack.c.b16 %v854, %v853
      %v884 = vpack.c.b16 %v856, %v855
      %v885 = vpack.c.b16 %v858, %v857
      %v886 = vpack.c.b16 %v860, %v859
      %v887 = vpack.c.b16 %v862, %v861
      %v888 = vpack.c.b16 %v864, %v863
      %v889 = vpack.c.b16 %v866, %v865
      %v890 = vpack.c.b16 %v868, %v867
      %v891 = vpack.c.b16 %v870, %v869
      %v892 = vpack.c.b16 %v872, %v871
      %v893 = vpack.c.b16 %v874, %v873
      %v894 = vpack.c.b16 %v876, %v875
      %v895 = vpack.c.b16 %v878, %v877
      %v896 = vpack.c.b16 %v880, %v879
      %v898 = vsel %vm675, %v881, 0
      %v901 = vsel %vm675, %v882, 0
      %v904 = vsel %vm675, %v883, 0
      %v907 = vsel %vm675, %v884, 0
      %v910 = vsel %vm675, %v885, 0
      %v913 = vsel %vm675, %v886, 0
      %v916 = vsel %vm675, %v887, 0
      %v919 = vsel %vm675, %v888, 0
      %v922 = vsel %vm675, %v889, 0
      %v925 = vsel %vm675, %v890, 0
      %v928 = vsel %vm675, %v891, 0
      %v931 = vsel %vm675, %v892, 0
      %v934 = vsel %vm675, %v893, 0
      %v937 = vsel %vm675, %v894, 0
      %v940 = vsel %vm675, %v895, 0
      %v943 = vsel %vm675, %v896, 0
      %v946 = vsel %vm724, %v237, 0
      %948 = vmatpush.bf16.msra.mxu0 0
      %949 = vmatpush.bf16.msra.mxu0 0
      %950 = vmatpush.bf16.msra.mxu0 0
      %951 = vmatpush.bf16.msra.mxu0 0
      %952 = vmatpush.bf16.msra.mxu0 0
      %953 = vmatpush.bf16.msra.mxu0 0
      %954 = vmatpush.bf16.msra.mxu0 0
      %955 = vmatpush.bf16.msra.mxu0 %v946
      %956 = vmatmul.bf16.gmra.mxu0 %v898
      %v957 = vpop.f32.mrf.mxu0
      %v958 = vadd.f32 %v738, %v957
      %v959 = vpop.f32.mrf.mxu0
      %v960 = vadd.f32 %v740, %v959
      %961 = vmatmul.bf16.gmra.mxu0 %v901
      %v962 = vpop.f32.mrf.mxu0
      %v963 = vadd.f32 %v743, %v962
      %v964 = vpop.f32.mrf.mxu0
      %v965 = vadd.f32 %v745, %v964
      %966 = vmatmul.bf16.gmra.mxu0 %v904
      %v967 = vpop.f32.mrf.mxu0
      %v968 = vadd.f32 %v748, %v967
      %v969 = vpop.f32.mrf.mxu0
      %v970 = vadd.f32 %v750, %v969
      %971 = vmatmul.bf16.gmra.mxu0 %v907
      %v972 = vpop.f32.mrf.mxu0
      %v973 = vadd.f32 %v753, %v972
      %v974 = vpop.f32.mrf.mxu0
      %v975 = vadd.f32 %v755, %v974
      %976 = vmatmul.bf16.gmra.mxu0 %v910
      %v977 = vpop.f32.mrf.mxu0
      %v978 = vadd.f32 %v758, %v977
      %v979 = vpop.f32.mrf.mxu0
      %v980 = vadd.f32 %v760, %v979
      %981 = vmatmul.bf16.gmra.mxu0 %v913
      %v982 = vpop.f32.mrf.mxu0
      %v983 = vadd.f32 %v763, %v982
      %v984 = vpop.f32.mrf.mxu0
      %v985 = vadd.f32 %v765, %v984
      %986 = vmatmul.bf16.gmra.mxu0 %v916
      %v987 = vpop.f32.mrf.mxu0
      %v988 = vadd.f32 %v768, %v987
      %v989 = vpop.f32.mrf.mxu0
      %v990 = vadd.f32 %v770, %v989
      %991 = vmatmul.bf16.gmra.mxu0 %v919
      %v992 = vpop.f32.mrf.mxu0
      %v993 = vadd.f32 %v773, %v992
      %v994 = vpop.f32.mrf.mxu0
      %v995 = vadd.f32 %v775, %v994
      %996 = vmatmul.bf16.gmra.mxu0 %v922
      %v997 = vpop.f32.mrf.mxu0
      %v998 = vadd.f32 %v778, %v997
      %v999 = vpop.f32.mrf.mxu0
      %v1000 = vadd.f32 %v780, %v999
      %1001 = vmatmul.bf16.gmra.mxu0 %v925
      %v1002 = vpop.f32.mrf.mxu0
      %v1003 = vadd.f32 %v783, %v1002
      %v1004 = vpop.f32.mrf.mxu0
      %v1005 = vadd.f32 %v785, %v1004
      %1006 = vmatmul.bf16.gmra.mxu0 %v928
      %v1007 = vpop.f32.mrf.mxu0
      %v1008 = vadd.f32 %v788, %v1007
      %v1009 = vpop.f32.mrf.mxu0
      %v1010 = vadd.f32 %v790, %v1009
      %1011 = vmatmul.bf16.gmra.mxu0 %v931
      %v1012 = vpop.f32.mrf.mxu0
      %v1013 = vadd.f32 %v793, %v1012
      %v1014 = vpop.f32.mrf.mxu0
      %v1015 = vadd.f32 %v795, %v1014
      %1016 = vmatmul.bf16.gmra.mxu0 %v934
      %v1017 = vpop.f32.mrf.mxu0
      %v1018 = vadd.f32 %v798, %v1017
      %v1019 = vpop.f32.mrf.mxu0
      %v1020 = vadd.f32 %v800, %v1019
      %1021 = vmatmul.bf16.gmra.mxu0 %v937
      %v1022 = vpop.f32.mrf.mxu0
      %v1023 = vadd.f32 %v803, %v1022
      %v1024 = vpop.f32.mrf.mxu0
      %v1025 = vadd.f32 %v805, %v1024
      %1026 = vmatmul.bf16.gmra.mxu0 %v940
      %v1027 = vpop.f32.mrf.mxu0
      %v1028 = vadd.f32 %v808, %v1027
      %v1029 = vpop.f32.mrf.mxu0
      %v1030 = vadd.f32 %v810, %v1029
      %1031 = vmatmul.bf16.gmra.mxu0 %v943
      %v1032 = vpop.f32.mrf.mxu0
      %v1033 = vadd.f32 %v813, %v1032
      %v1034 = vpop.f32.mrf.mxu0
      %v1035 = vadd.f32 %v815, %v1034
      %1036 = vdwg.mxu0
      %vm1053 = vcmask 1042432
      %vm1054 = vcmask 1046532
      %vm1055 = vmor %vm1053, %vm1054
      %v1056 = vrot.slane %v183, 5
      %v1057 = vrot.slane %v1056, 4
      %v1058 = vrot.slane %v184, 5
      %v1059 = vsel %vm1055, %v1057, %v1058
      %v1060 = vrot.slane %v1058, 4
      %v1061 = vrot.slane %v185, 5
      %v1062 = vsel %vm1055, %v1060, %v1061
      %v1063 = vrot.slane %v186, 5
      %v1064 = vrot.slane %v1063, 4
      %v1065 = vrot.slane %v187, 5
      %v1066 = vsel %vm1055, %v1064, %v1065
      %v1067 = vrot.slane %v1065, 4
      %v1068 = vrot.slane %v188, 5
      %v1069 = vsel %vm1055, %v1067, %v1068
      %v1070 = vrot.slane %v189, 5
      %v1071 = vrot.slane %v1070, 4
      %v1072 = vrot.slane %v190, 5
      %v1073 = vsel %vm1055, %v1071, %v1072
      %v1074 = vrot.slane %v1072, 4
      %v1075 = vrot.slane %v191, 5
      %v1076 = vsel %vm1055, %v1074, %v1075
      %v1077 = vrot.slane %v192, 5
      %v1078 = vrot.slane %v1077, 4
      %v1079 = vrot.slane %v193, 5
      %v1080 = vsel %vm1055, %v1078, %v1079
      %v1081 = vrot.slane %v1079, 4
      %v1082 = vrot.slane %v194, 5
      %v1083 = vsel %vm1055, %v1081, %v1082
      %v1084 = vrot.slane %v195, 5
      %v1085 = vrot.slane %v1084, 4
      %v1086 = vrot.slane %v196, 5
      %v1087 = vsel %vm1055, %v1085, %v1086
      %v1088 = vrot.slane %v1086, 4
      %v1089 = vrot.slane %v197, 5
      %v1090 = vsel %vm1055, %v1088, %v1089
      %v1091 = vrot.slane %v198, 5
      %v1092 = vrot.slane %v1091, 4
      %v1093 = vrot.slane %v199, 5
      %v1094 = vsel %vm1055, %v1092, %v1093
      %v1095 = vrot.slane %v1093, 4
      %v1096 = vrot.slane %v200, 5
      %v1097 = vsel %vm1055, %v1095, %v1096
      %v1098 = vrot.slane %v201, 5
      %v1099 = vrot.slane %v1098, 4
      %v1100 = vrot.slane %v202, 5
      %v1101 = vsel %vm1055, %v1099, %v1100
      %v1102 = vrot.slane %v1100, 4
      %v1103 = vrot.slane %v203, 5
      %v1104 = vsel %vm1055, %v1102, %v1103
      %v1105 = vrot.slane %v204, 5
      %v1106 = vrot.slane %v1105, 4
      %v1107 = vrot.slane %v205, 5
      %v1108 = vsel %vm1055, %v1106, %v1107
      %v1109 = vrot.slane %v1107, 4
      %v1110 = vrot.slane %v206, 5
      %v1111 = vsel %vm1055, %v1109, %v1110
      %v1112 = vrot.slane %v207, 5
      %v1113 = vrot.slane %v1112, 4
      %v1114 = vrot.slane %v208, 5
      %v1115 = vsel %vm1055, %v1113, %v1114
      %v1116 = vrot.slane %v1114, 4
      %v1117 = vrot.slane %v209, 5
      %v1118 = vsel %vm1055, %v1116, %v1117
      %v1119 = vrot.slane %v210, 5
      %v1120 = vrot.slane %v1119, 4
      %v1121 = vrot.slane %v211, 5
      %v1122 = vsel %vm1055, %v1120, %v1121
      %v1123 = vrot.slane %v1121, 4
      %v1124 = vrot.slane %v212, 5
      %v1125 = vsel %vm1055, %v1123, %v1124
      %v1126 = vrot.slane %v213, 5
      %v1127 = vrot.slane %v1126, 4
      %v1128 = vrot.slane %v214, 5
      %v1129 = vsel %vm1055, %v1127, %v1128
      %v1130 = vrot.slane %v1128, 4
      %v1131 = vrot.slane %v215, 5
      %v1132 = vsel %vm1055, %v1130, %v1131
      %v1133 = vrot.slane %v216, 5
      %v1134 = vrot.slane %v1133, 4
      %v1135 = vrot.slane %v217, 5
      %v1136 = vsel %vm1055, %v1134, %v1135
      %v1137 = vrot.slane %v1135, 4
      %v1138 = vrot.slane %v218, 5
      %v1139 = vsel %vm1055, %v1137, %v1138
      %v1140 = vrot.slane %v219, 5
      %v1141 = vrot.slane %v1140, 4
      %v1142 = vrot.slane %v220, 5
      %v1143 = vsel %vm1055, %v1141, %v1142
      %v1144 = vrot.slane %v1142, 4
      %v1145 = vrot.slane %v221, 5
      %v1146 = vsel %vm1055, %v1144, %v1145
      %v1147 = vrot.slane %v222, 5
      %v1148 = vrot.slane %v1147, 4
      %v1149 = vrot.slane %v223, 5
      %v1150 = vsel %vm1055, %v1148, %v1149
      %v1151 = vrot.slane %v1149, 4
      %v1152 = vrot.slane %v224, 5
      %v1153 = vsel %vm1055, %v1151, %v1152
      %v1154 = vrot.slane %v225, 5
      %v1155 = vrot.slane %v1154, 4
      %v1156 = vrot.slane %v226, 5
      %v1157 = vsel %vm1055, %v1155, %v1156
      %v1158 = vrot.slane %v1156, 4
      %v1159 = vrot.slane %v227, 5
      %v1160 = vsel %vm1055, %v1158, %v1159
      %v1161 = vrot.slane %v228, 5
      %v1162 = vrot.slane %v1161, 4
      %v1163 = vrot.slane %v229, 5
      %v1164 = vsel %vm1055, %v1162, %v1163
      %v1165 = vrot.slane %v1163, 4
      %v1166 = vrot.slane %v230, 5
      %v1167 = vsel %vm1055, %v1165, %v1166
      %s1168 = scalar_lea.vmem %s1, 4
      %v1169 = vld [vmem:[%s1168] sm:$0x3]
      %v1170 = vunpack.c.l.b16 %v1059
      %v1171 = vunpack.c.l.b16 %v1062
      %v1172 = vunpack.c.l.b16 %v1066
      %v1173 = vunpack.c.l.b16 %v1069
      %v1174 = vunpack.c.l.b16 %v1073
      %v1175 = vunpack.c.l.b16 %v1076
      %v1176 = vunpack.c.l.b16 %v1080
      %v1177 = vunpack.c.l.b16 %v1083
      %v1178 = vunpack.c.l.b16 %v1087
      %v1179 = vunpack.c.l.b16 %v1090
      %v1180 = vunpack.c.l.b16 %v1094
      %v1181 = vunpack.c.l.b16 %v1097
      %v1182 = vunpack.c.l.b16 %v1101
      %v1183 = vunpack.c.l.b16 %v1104
      %v1184 = vunpack.c.l.b16 %v1108
      %v1185 = vunpack.c.l.b16 %v1111
      %v1186 = vunpack.c.l.b16 %v1115
      %v1187 = vunpack.c.l.b16 %v1118
      %v1188 = vunpack.c.l.b16 %v1122
      %v1189 = vunpack.c.l.b16 %v1125
      %v1190 = vunpack.c.l.b16 %v1129
      %v1191 = vunpack.c.l.b16 %v1132
      %v1192 = vunpack.c.l.b16 %v1136
      %v1193 = vunpack.c.l.b16 %v1139
      %v1194 = vunpack.c.l.b16 %v1143
      %v1195 = vunpack.c.l.b16 %v1146
      %v1196 = vunpack.c.l.b16 %v1150
      %v1197 = vunpack.c.l.b16 %v1153
      %v1198 = vunpack.c.l.b16 %v1157
      %v1199 = vunpack.c.l.b16 %v1160
      %v1200 = vunpack.c.l.b16 %v1164
      %v1201 = vunpack.c.l.b16 %v1167
      %v1202 = vpack.c.b16 %v1171, %v1170
      %v1203 = vpack.c.b16 %v1173, %v1172
      %v1204 = vpack.c.b16 %v1175, %v1174
      %v1205 = vpack.c.b16 %v1177, %v1176
      %v1206 = vpack.c.b16 %v1179, %v1178
      %v1207 = vpack.c.b16 %v1181, %v1180
      %v1208 = vpack.c.b16 %v1183, %v1182
      %v1209 = vpack.c.b16 %v1185, %v1184
      %v1210 = vpack.c.b16 %v1187, %v1186
      %v1211 = vpack.c.b16 %v1189, %v1188
      %v1212 = vpack.c.b16 %v1191, %v1190
      %v1213 = vpack.c.b16 %v1193, %v1192
      %v1214 = vpack.c.b16 %v1195, %v1194
      %v1215 = vpack.c.b16 %v1197, %v1196
      %v1216 = vpack.c.b16 %v1199, %v1198
      %v1217 = vpack.c.b16 %v1201, %v1200
      %v1219 = vsel %vm675, %v1202, 0
      %v1222 = vsel %vm675, %v1203, 0
      %v1225 = vsel %vm675, %v1204, 0
      %v1228 = vsel %vm675, %v1205, 0
      %v1231 = vsel %vm675, %v1206, 0
      %v1234 = vsel %vm675, %v1207, 0
      %v1237 = vsel %vm675, %v1208, 0
      %v1240 = vsel %vm675, %v1209, 0
      %v1243 = vsel %vm675, %v1210, 0
      %v1246 = vsel %vm675, %v1211, 0
      %v1249 = vsel %vm675, %v1212, 0
      %v1252 = vsel %vm675, %v1213, 0
      %v1255 = vsel %vm675, %v1214, 0
      %v1258 = vsel %vm675, %v1215, 0
      %v1261 = vsel %vm675, %v1216, 0
      %v1264 = vsel %vm675, %v1217, 0
      %v1267 = vsel %vm724, %v1169, 0
      %1269 = vmatpush.bf16.msra.mxu0 0
      %1270 = vmatpush.bf16.msra.mxu0 0
      %1271 = vmatpush.bf16.msra.mxu0 0
      %1272 = vmatpush.bf16.msra.mxu0 0
      %1273 = vmatpush.bf16.msra.mxu0 0
      %1274 = vmatpush.bf16.msra.mxu0 0
      %1275 = vmatpush.bf16.msra.mxu0 0
      %1276 = vmatpush.bf16.msra.mxu0 %v1267
      %1277 = vmatmul.bf16.gmra.mxu0 %v1219
      %v1278 = vpop.f32.mrf.mxu0
      %v1279 = vadd.f32 0.0, %v1278
      %v1280 = vpop.f32.mrf.mxu0
      %v1281 = vadd.f32 0.0, %v1280
      %1282 = vmatmul.bf16.gmra.mxu0 %v1222
      %v1283 = vpop.f32.mrf.mxu0
      %v1284 = vadd.f32 0.0, %v1283
      %v1285 = vpop.f32.mrf.mxu0
      %v1286 = vadd.f32 0.0, %v1285
      %1287 = vmatmul.bf16.gmra.mxu0 %v1225
      %v1288 = vpop.f32.mrf.mxu0
      %v1289 = vadd.f32 0.0, %v1288
      %v1290 = vpop.f32.mrf.mxu0
      %v1291 = vadd.f32 0.0, %v1290
      %1292 = vmatmul.bf16.gmra.mxu0 %v1228
      %v1293 = vpop.f32.mrf.mxu0
      %v1294 = vadd.f32 0.0, %v1293
      %v1295 = vpop.f32.mrf.mxu0
      %v1296 = vadd.f32 0.0, %v1295
      %1297 = vmatmul.bf16.gmra.mxu0 %v1231
      %v1298 = vpop.f32.mrf.mxu0
      %v1299 = vadd.f32 0.0, %v1298
      %v1300 = vpop.f32.mrf.mxu0
      %v1301 = vadd.f32 0.0, %v1300
      %1302 = vmatmul.bf16.gmra.mxu0 %v1234
      %v1303 = vpop.f32.mrf.mxu0
      %v1304 = vadd.f32 0.0, %v1303
      %v1305 = vpop.f32.mrf.mxu0
      %v1306 = vadd.f32 0.0, %v1305
      %1307 = vmatmul.bf16.gmra.mxu0 %v1237
      %v1308 = vpop.f32.mrf.mxu0
      %v1309 = vadd.f32 0.0, %v1308
      %v1310 = vpop.f32.mrf.mxu0
      %v1311 = vadd.f32 0.0, %v1310
      %1312 = vmatmul.bf16.gmra.mxu0 %v1240
      %v1313 = vpop.f32.mrf.mxu0
      %v1314 = vadd.f32 0.0, %v1313
      %v1315 = vpop.f32.mrf.mxu0
      %v1316 = vadd.f32 0.0, %v1315
      %1317 = vmatmul.bf16.gmra.mxu0 %v1243
      %v1318 = vpop.f32.mrf.mxu0
      %v1319 = vadd.f32 0.0, %v1318
      %v1320 = vpop.f32.mrf.mxu0
      %v1321 = vadd.f32 0.0, %v1320
      %1322 = vmatmul.bf16.gmra.mxu0 %v1246
      %v1323 = vpop.f32.mrf.mxu0
      %v1324 = vadd.f32 0.0, %v1323
      %v1325 = vpop.f32.mrf.mxu0
      %v1326 = vadd.f32 0.0, %v1325
      %1327 = vmatmul.bf16.gmra.mxu0 %v1249
      %v1328 = vpop.f32.mrf.mxu0
      %v1329 = vadd.f32 0.0, %v1328
      %v1330 = vpop.f32.mrf.mxu0
      %v1331 = vadd.f32 0.0, %v1330
      %1332 = vmatmul.bf16.gmra.mxu0 %v1252
      %v1333 = vpop.f32.mrf.mxu0
      %v1334 = vadd.f32 0.0, %v1333
      %v1335 = vpop.f32.mrf.mxu0
      %v1336 = vadd.f32 0.0, %v1335
      %1337 = vmatmul.bf16.gmra.mxu0 %v1255
      %v1338 = vpop.f32.mrf.mxu0
      %v1339 = vadd.f32 0.0, %v1338
      %v1340 = vpop.f32.mrf.mxu0
      %v1341 = vadd.f32 0.0, %v1340
      %1342 = vmatmul.bf16.gmra.mxu0 %v1258
      %v1343 = vpop.f32.mrf.mxu0
      %v1344 = vadd.f32 0.0, %v1343
      %v1345 = vpop.f32.mrf.mxu0
      %v1346 = vadd.f32 0.0, %v1345
      %1347 = vmatmul.bf16.gmra.mxu0 %v1261
      %v1348 = vpop.f32.mrf.mxu0
      %v1349 = vadd.f32 0.0, %v1348
      %v1350 = vpop.f32.mrf.mxu0
      %v1351 = vadd.f32 0.0, %v1350
      %1352 = vmatmul.bf16.gmra.mxu0 %v1264
      %v1353 = vpop.f32.mrf.mxu0
      %v1354 = vadd.f32 0.0, %v1353
      %v1355 = vpop.f32.mrf.mxu0
      %v1356 = vadd.f32 0.0, %v1355
      %1357 = vdwg.mxu0
      %v1358 = vadd.f32 %v958, %v1279
      %v1359 = vadd.f32 %v960, %v1281
      %v1360 = vadd.f32 %v963, %v1284
      %v1361 = vadd.f32 %v965, %v1286
      %v1362 = vadd.f32 %v968, %v1289
      %v1363 = vadd.f32 %v970, %v1291
      %v1364 = vadd.f32 %v973, %v1294
      %v1365 = vadd.f32 %v975, %v1296
      %v1366 = vadd.f32 %v978, %v1299
      %v1367 = vadd.f32 %v980, %v1301
      %v1368 = vadd.f32 %v983, %v1304
      %v1369 = vadd.f32 %v985, %v1306
      %v1370 = vadd.f32 %v988, %v1309
      %v1371 = vadd.f32 %v990, %v1311
      %v1372 = vadd.f32 %v993, %v1314
      %v1373 = vadd.f32 %v995, %v1316
      %v1374 = vadd.f32 %v998, %v1319
      %v1375 = vadd.f32 %v1000, %v1321
      %v1376 = vadd.f32 %v1003, %v1324
      %v1377 = vadd.f32 %v1005, %v1326
      %v1378 = vadd.f32 %v1008, %v1329
      %v1379 = vadd.f32 %v1010, %v1331
      %v1380 = vadd.f32 %v1013, %v1334
      %v1381 = vadd.f32 %v1015, %v1336
      %v1382 = vadd.f32 %v1018, %v1339
      %v1383 = vadd.f32 %v1020, %v1341
      %v1384 = vadd.f32 %v1023, %v1344
      %v1385 = vadd.f32 %v1025, %v1346
      %v1386 = vadd.f32 %v1028, %v1349
      %v1387 = vadd.f32 %v1030, %v1351
      %v1388 = vadd.f32 %v1033, %v1354
      %v1389 = vadd.f32 %v1035, %v1356
      %s1390 = scalar_lea.vmem %s1, 6
      %v1391 = vld [vmem:[%s1390] sm:$0x3]
      %v1394 = vunpack.c.l.b16 %v231
      %v1395 = vunpack.c.l.b16 %v232
      %v1396 = vpack.c.b16 %v1395, %v1394
      %v1398 = vsel %vm675, %v1396, 0
      %v1401 = vsel %vm724, %v1391, 0
      %1403 = vmatpush.bf16.msra.mxu0 0
      %1404 = vmatpush.bf16.msra.mxu0 0
      %1405 = vmatpush.bf16.msra.mxu0 0
      %1406 = vmatpush.bf16.msra.mxu0 0
      %1407 = vmatpush.bf16.msra.mxu0 0
      %1408 = vmatpush.bf16.msra.mxu0 0
      %1409 = vmatpush.bf16.msra.mxu0 0
      %1410 = vmatpush.bf16.msra.mxu0 %v1401
      %1411 = vmatmul.bf16.gmra.mxu0 %v901
      %v1412 = vpop.f32.mrf.mxu0
      %v1413 = vadd.f32 0.0, %v1412
      %v1414 = vpop.f32.mrf.mxu0
      %v1415 = vadd.f32 0.0, %v1414
      %1416 = vmatmul.bf16.gmra.mxu0 %v904
      %v1417 = vpop.f32.mrf.mxu0
      %v1418 = vadd.f32 0.0, %v1417
      %v1419 = vpop.f32.mrf.mxu0
      %v1420 = vadd.f32 0.0, %v1419
      %1421 = vmatmul.bf16.gmra.mxu0 %v907
      %v1422 = vpop.f32.mrf.mxu0
      %v1423 = vadd.f32 0.0, %v1422
      %v1424 = vpop.f32.mrf.mxu0
      %v1425 = vadd.f32 0.0, %v1424
      %1426 = vmatmul.bf16.gmra.mxu0 %v910
      %v1427 = vpop.f32.mrf.mxu0
      %v1428 = vadd.f32 0.0, %v1427
      %v1429 = vpop.f32.mrf.mxu0
      %v1430 = vadd.f32 0.0, %v1429
      %1431 = vmatmul.bf16.gmra.mxu0 %v913
      %v1432 = vpop.f32.mrf.mxu0
      %v1433 = vadd.f32 0.0, %v1432
      %v1434 = vpop.f32.mrf.mxu0
      %v1435 = vadd.f32 0.0, %v1434
      %1436 = vmatmul.bf16.gmra.mxu0 %v916
      %v1437 = vpop.f32.mrf.mxu0
      %v1438 = vadd.f32 0.0, %v1437
      %v1439 = vpop.f32.mrf.mxu0
      %v1440 = vadd.f32 0.0, %v1439
      %1441 = vmatmul.bf16.gmra.mxu0 %v919
      %v1442 = vpop.f32.mrf.mxu0
      %v1443 = vadd.f32 0.0, %v1442
      %v1444 = vpop.f32.mrf.mxu0
      %v1445 = vadd.f32 0.0, %v1444
      %1446 = vmatmul.bf16.gmra.mxu0 %v922
      %v1447 = vpop.f32.mrf.mxu0
      %v1448 = vadd.f32 0.0, %v1447
      %v1449 = vpop.f32.mrf.mxu0
      %v1450 = vadd.f32 0.0, %v1449
      %1451 = vmatmul.bf16.gmra.mxu0 %v925
      %v1452 = vpop.f32.mrf.mxu0
      %v1453 = vadd.f32 0.0, %v1452
      %v1454 = vpop.f32.mrf.mxu0
      %v1455 = vadd.f32 0.0, %v1454
      %1456 = vmatmul.bf16.gmra.mxu0 %v928
      %v1457 = vpop.f32.mrf.mxu0
      %v1458 = vadd.f32 0.0, %v1457
      %v1459 = vpop.f32.mrf.mxu0
      %v1460 = vadd.f32 0.0, %v1459
      %1461 = vmatmul.bf16.gmra.mxu0 %v931
      %v1462 = vpop.f32.mrf.mxu0
      %v1463 = vadd.f32 0.0, %v1462
      %v1464 = vpop.f32.mrf.mxu0
      %v1465 = vadd.f32 0.0, %v1464
      %1466 = vmatmul.bf16.gmra.mxu0 %v934
      %v1467 = vpop.f32.mrf.mxu0
      %v1468 = vadd.f32 0.0, %v1467
      %v1469 = vpop.f32.mrf.mxu0
      %v1470 = vadd.f32 0.0, %v1469
      %1471 = vmatmul.bf16.gmra.mxu0 %v937
      %v1472 = vpop.f32.mrf.mxu0
      %v1473 = vadd.f32 0.0, %v1472
      %v1474 = vpop.f32.mrf.mxu0
      %v1475 = vadd.f32 0.0, %v1474
      %1476 = vmatmul.bf16.gmra.mxu0 %v940
      %v1477 = vpop.f32.mrf.mxu0
      %v1478 = vadd.f32 0.0, %v1477
      %v1479 = vpop.f32.mrf.mxu0
      %v1480 = vadd.f32 0.0, %v1479
      %1481 = vmatmul.bf16.gmra.mxu0 %v943
      %v1482 = vpop.f32.mrf.mxu0
      %v1483 = vadd.f32 0.0, %v1482
      %v1484 = vpop.f32.mrf.mxu0
      %v1485 = vadd.f32 0.0, %v1484
      %1486 = vmatmul.bf16.gmra.mxu0 %v1398
      %v1487 = vpop.f32.mrf.mxu0
      %v1488 = vadd.f32 0.0, %v1487
      %v1489 = vpop.f32.mrf.mxu0
      %v1490 = vadd.f32 0.0, %v1489
      %1491 = vdwg.mxu0
      %v1492 = vadd.f32 %v1358, %v1413
      %v1493 = vadd.f32 %v1359, %v1415
      %v1494 = vadd.f32 %v1360, %v1418
      %v1495 = vadd.f32 %v1361, %v1420
      %v1496 = vadd.f32 %v1362, %v1423
      %v1497 = vadd.f32 %v1363, %v1425
      %v1498 = vadd.f32 %v1364, %v1428
      %v1499 = vadd.f32 %v1365, %v1430
      %v1500 = vadd.f32 %v1366, %v1433
      %v1501 = vadd.f32 %v1367, %v1435
      %v1502 = vadd.f32 %v1368, %v1438
      %v1503 = vadd.f32 %v1369, %v1440
      %v1504 = vadd.f32 %v1370, %v1443
      %v1505 = vadd.f32 %v1371, %v1445
      %v1506 = vadd.f32 %v1372, %v1448
      %v1507 = vadd.f32 %v1373, %v1450
      %v1508 = vadd.f32 %v1374, %v1453
      %v1509 = vadd.f32 %v1375, %v1455
      %v1510 = vadd.f32 %v1376, %v1458
      %v1511 = vadd.f32 %v1377, %v1460
      %v1512 = vadd.f32 %v1378, %v1463
      %v1513 = vadd.f32 %v1379, %v1465
      %v1514 = vadd.f32 %v1380, %v1468
      %v1515 = vadd.f32 %v1381, %v1470
      %v1516 = vadd.f32 %v1382, %v1473
      %v1517 = vadd.f32 %v1383, %v1475
      %v1518 = vadd.f32 %v1384, %v1478
      %v1519 = vadd.f32 %v1385, %v1480
      %v1520 = vadd.f32 %v1386, %v1483
      %v1521 = vadd.f32 %v1387, %v1485
      %v1522 = vadd.f32 %v1388, %v1488
      %v1523 = vadd.f32 %v1389, %v1490
      %v1525 = vshrl.u32 %v231, 16
      %v1527 = vrot.slane %v1525, 4
      %v1528 = vshll.u32 %v231, 16
      %v1530 = vrot.slane %v1528, 5
      %v1531 = vor.u32 %v1527, %v1530
      %v1532 = vrot.slane %v1531, 4
      %v1534 = vshll.u32 %v232, 16
      %v1536 = vrot.slane %v1534, 5
      %v1537 = vsel %vm240, %v1532, %v1536
      %v1538 = vshrl.u32 %v232, 16
      %v1540 = vrot.slane %v1538, 4
      %v1541 = vor.u32 %v1540, %v1536
      %v1542 = vrot.slane %v1541, 4
      %v1544 = vshll.u32 %v233, 16
      %v1546 = vrot.slane %v1544, 5
      %v1547 = vsel %vm240, %v1542, %v1546
      %s1548 = scalar_lea.vmem %s1, 8
      %v1549 = vld [vmem:[%s1548] sm:$0x3]
      %v1550 = vunpack.c.l.b16 %v1537
      %v1551 = vunpack.c.l.b16 %v1547
      %v1552 = vpack.c.b16 %v1551, %v1550
      %v1554 = vsel %vm675, %v1552, 0
      %v1557 = vsel %vm724, %v1549, 0
      %1559 = vmatpush.bf16.msra.mxu0 0
      %1560 = vmatpush.bf16.msra.mxu0 0
      %1561 = vmatpush.bf16.msra.mxu0 0
      %1562 = vmatpush.bf16.msra.mxu0 0
      %1563 = vmatpush.bf16.msra.mxu0 0
      %1564 = vmatpush.bf16.msra.mxu0 0
      %1565 = vmatpush.bf16.msra.mxu0 0
      %1566 = vmatpush.bf16.msra.mxu0 %v1557
      %1567 = vmatmul.bf16.gmra.mxu0 %v680
      %v1568 = vpop.f32.mrf.mxu0
      %v1569 = vadd.f32 0.0, %v1568
      %v1570 = vpop.f32.mrf.mxu0
      %v1571 = vadd.f32 0.0, %v1570
      %1572 = vmatmul.bf16.gmra.mxu0 %v683
      %v1573 = vpop.f32.mrf.mxu0
      %v1574 = vadd.f32 0.0, %v1573
      %v1575 = vpop.f32.mrf.mxu0
      %v1576 = vadd.f32 0.0, %v1575
      %1577 = vmatmul.bf16.gmra.mxu0 %v686
      %v1578 = vpop.f32.mrf.mxu0
      %v1579 = vadd.f32 0.0, %v1578
      %v1580 = vpop.f32.mrf.mxu0
      %v1581 = vadd.f32 0.0, %v1580
      %1582 = vmatmul.bf16.gmra.mxu0 %v689
      %v1583 = vpop.f32.mrf.mxu0
      %v1584 = vadd.f32 0.0, %v1583
      %v1585 = vpop.f32.mrf.mxu0
      %v1586 = vadd.f32 0.0, %v1585
      %1587 = vmatmul.bf16.gmra.mxu0 %v692
      %v1588 = vpop.f32.mrf.mxu0
      %v1589 = vadd.f32 0.0, %v1588
      %v1590 = vpop.f32.mrf.mxu0
      %v1591 = vadd.f32 0.0, %v1590
      %1592 = vmatmul.bf16.gmra.mxu0 %v695
      %v1593 = vpop.f32.mrf.mxu0
      %v1594 = vadd.f32 0.0, %v1593
      %v1595 = vpop.f32.mrf.mxu0
      %v1596 = vadd.f32 0.0, %v1595
      %1597 = vmatmul.bf16.gmra.mxu0 %v698
      %v1598 = vpop.f32.mrf.mxu0
      %v1599 = vadd.f32 0.0, %v1598
      %v1600 = vpop.f32.mrf.mxu0
      %v1601 = vadd.f32 0.0, %v1600
      %1602 = vmatmul.bf16.gmra.mxu0 %v701
      %v1603 = vpop.f32.mrf.mxu0
      %v1604 = vadd.f32 0.0, %v1603
      %v1605 = vpop.f32.mrf.mxu0
      %v1606 = vadd.f32 0.0, %v1605
      %1607 = vmatmul.bf16.gmra.mxu0 %v704
      %v1608 = vpop.f32.mrf.mxu0
      %v1609 = vadd.f32 0.0, %v1608
      %v1610 = vpop.f32.mrf.mxu0
      %v1611 = vadd.f32 0.0, %v1610
      %1612 = vmatmul.bf16.gmra.mxu0 %v707
      %v1613 = vpop.f32.mrf.mxu0
      %v1614 = vadd.f32 0.0, %v1613
      %v1615 = vpop.f32.mrf.mxu0
      %v1616 = vadd.f32 0.0, %v1615
      %1617 = vmatmul.bf16.gmra.mxu0 %v710
      %v1618 = vpop.f32.mrf.mxu0
      %v1619 = vadd.f32 0.0, %v1618
      %v1620 = vpop.f32.mrf.mxu0
      %v1621 = vadd.f32 0.0, %v1620
      %1622 = vmatmul.bf16.gmra.mxu0 %v713
      %v1623 = vpop.f32.mrf.mxu0
      %v1624 = vadd.f32 0.0, %v1623
      %v1625 = vpop.f32.mrf.mxu0
      %v1626 = vadd.f32 0.0, %v1625
      %1627 = vmatmul.bf16.gmra.mxu0 %v716
      %v1628 = vpop.f32.mrf.mxu0
      %v1629 = vadd.f32 0.0, %v1628
      %v1630 = vpop.f32.mrf.mxu0
      %v1631 = vadd.f32 0.0, %v1630
      %1632 = vmatmul.bf16.gmra.mxu0 %v719
      %v1633 = vpop.f32.mrf.mxu0
      %v1634 = vadd.f32 0.0, %v1633
      %v1635 = vpop.f32.mrf.mxu0
      %v1636 = vadd.f32 0.0, %v1635
      %1637 = vmatmul.bf16.gmra.mxu0 %v722
      %v1638 = vpop.f32.mrf.mxu0
      %v1639 = vadd.f32 0.0, %v1638
      %v1640 = vpop.f32.mrf.mxu0
      %v1641 = vadd.f32 0.0, %v1640
      %1642 = vmatmul.bf16.gmra.mxu0 %v1554
      %v1643 = vpop.f32.mrf.mxu0
      %v1644 = vadd.f32 0.0, %v1643
      %v1645 = vpop.f32.mrf.mxu0
      %v1646 = vadd.f32 0.0, %v1645
      %1647 = vdwg.mxu0
      %v1648 = vadd.f32 %v1492, %v1569
      %v1649 = vadd.f32 %v1493, %v1571
      %v1650 = vadd.f32 %v1494, %v1574
      %v1651 = vadd.f32 %v1495, %v1576
      %v1652 = vadd.f32 %v1496, %v1579
      %v1653 = vadd.f32 %v1497, %v1581
      %v1654 = vadd.f32 %v1498, %v1584
      %v1655 = vadd.f32 %v1499, %v1586
      %v1656 = vadd.f32 %v1500, %v1589
      %v1657 = vadd.f32 %v1501, %v1591
      %v1658 = vadd.f32 %v1502, %v1594
      %v1659 = vadd.f32 %v1503, %v1596
      %v1660 = vadd.f32 %v1504, %v1599
      %v1661 = vadd.f32 %v1505, %v1601
      %v1662 = vadd.f32 %v1506, %v1604
      %v1663 = vadd.f32 %v1507, %v1606
      %v1664 = vadd.f32 %v1508, %v1609
      %v1665 = vadd.f32 %v1509, %v1611
      %v1666 = vadd.f32 %v1510, %v1614
      %v1667 = vadd.f32 %v1511, %v1616
      %v1668 = vadd.f32 %v1512, %v1619
      %v1669 = vadd.f32 %v1513, %v1621
      %v1670 = vadd.f32 %v1514, %v1624
      %v1671 = vadd.f32 %v1515, %v1626
      %v1672 = vadd.f32 %v1516, %v1629
      %v1673 = vadd.f32 %v1517, %v1631
      %v1674 = vadd.f32 %v1518, %v1634
      %v1675 = vadd.f32 %v1519, %v1636
      %v1676 = vadd.f32 %v1520, %v1639
      %v1677 = vadd.f32 %v1521, %v1641
      %v1678 = vadd.f32 %v1522, %v1644
      %v1679 = vadd.f32 %v1523, %v1646
      %v1681 = vrot.slane %v231, 5
      %v1682 = vrot.slane %v1681, 4
      %v1683 = vrot.slane %v232, 5
      %v1684 = vsel %vm1055, %v1682, %v1683
      %v1685 = vrot.slane %v1683, 4
      %v1686 = vrot.slane %v233, 5
      %v1687 = vsel %vm1055, %v1685, %v1686
      %s1688 = scalar_lea.vmem %s1, 10
      %v1689 = vld [vmem:[%s1688] sm:$0x3]
      %v1690 = vunpack.c.l.b16 %v1684
      %v1691 = vunpack.c.l.b16 %v1687
      %v1692 = vpack.c.b16 %v1691, %v1690
      %v1694 = vsel %vm675, %v1692, 0
      %v1697 = vsel %vm724, %v1689, 0
      %1699 = vmatpush.bf16.msra.mxu0 0
      %1700 = vmatpush.bf16.msra.mxu0 0
      %1701 = vmatpush.bf16.msra.mxu0 0
      %1702 = vmatpush.bf16.msra.mxu0 0
      %1703 = vmatpush.bf16.msra.mxu0 0
      %1704 = vmatpush.bf16.msra.mxu0 0
      %1705 = vmatpush.bf16.msra.mxu0 0
      %1706 = vmatpush.bf16.msra.mxu0 %v1697
      %1707 = vmatmul.bf16.gmra.mxu0 %v1222
      %v1708 = vpop.f32.mrf.mxu0
      %v1709 = vadd.f32 0.0, %v1708
      %v1710 = vpop.f32.mrf.mxu0
      %v1711 = vadd.f32 0.0, %v1710
      %1712 = vmatmul.bf16.gmra.mxu0 %v1225
      %v1713 = vpop.f32.mrf.mxu0
      %v1714 = vadd.f32 0.0, %v1713
      %v1715 = vpop.f32.mrf.mxu0
      %v1716 = vadd.f32 0.0, %v1715
      %1717 = vmatmul.bf16.gmra.mxu0 %v1228
      %v1718 = vpop.f32.mrf.mxu0
      %v1719 = vadd.f32 0.0, %v1718
      %v1720 = vpop.f32.mrf.mxu0
      %v1721 = vadd.f32 0.0, %v1720
      %1722 = vmatmul.bf16.gmra.mxu0 %v1231
      %v1723 = vpop.f32.mrf.mxu0
      %v1724 = vadd.f32 0.0, %v1723
      %v1725 = vpop.f32.mrf.mxu0
      %v1726 = vadd.f32 0.0, %v1725
      %1727 = vmatmul.bf16.gmra.mxu0 %v1234
      %v1728 = vpop.f32.mrf.mxu0
      %v1729 = vadd.f32 0.0, %v1728
      %v1730 = vpop.f32.mrf.mxu0
      %v1731 = vadd.f32 0.0, %v1730
      %1732 = vmatmul.bf16.gmra.mxu0 %v1237
      %v1733 = vpop.f32.mrf.mxu0
      %v1734 = vadd.f32 0.0, %v1733
      %v1735 = vpop.f32.mrf.mxu0
      %v1736 = vadd.f32 0.0, %v1735
      %1737 = vmatmul.bf16.gmra.mxu0 %v1240
      %v1738 = vpop.f32.mrf.mxu0
      %v1739 = vadd.f32 0.0, %v1738
      %v1740 = vpop.f32.mrf.mxu0
      %v1741 = vadd.f32 0.0, %v1740
      %1742 = vmatmul.bf16.gmra.mxu0 %v1243
      %v1743 = vpop.f32.mrf.mxu0
      %v1744 = vadd.f32 0.0, %v1743
      %v1745 = vpop.f32.mrf.mxu0
      %v1746 = vadd.f32 0.0, %v1745
      %1747 = vmatmul.bf16.gmra.mxu0 %v1246
      %v1748 = vpop.f32.mrf.mxu0
      %v1749 = vadd.f32 0.0, %v1748
      %v1750 = vpop.f32.mrf.mxu0
      %v1751 = vadd.f32 0.0, %v1750
      %1752 = vmatmul.bf16.gmra.mxu0 %v1249
      %v1753 = vpop.f32.mrf.mxu0
      %v1754 = vadd.f32 0.0, %v1753
      %v1755 = vpop.f32.mrf.mxu0
      %v1756 = vadd.f32 0.0, %v1755
      %1757 = vmatmul.bf16.gmra.mxu0 %v1252
      %v1758 = vpop.f32.mrf.mxu0
      %v1759 = vadd.f32 0.0, %v1758
      %v1760 = vpop.f32.mrf.mxu0
      %v1761 = vadd.f32 0.0, %v1760
      %1762 = vmatmul.bf16.gmra.mxu0 %v1255
      %v1763 = vpop.f32.mrf.mxu0
      %v1764 = vadd.f32 0.0, %v1763
      %v1765 = vpop.f32.mrf.mxu0
      %v1766 = vadd.f32 0.0, %v1765
      %1767 = vmatmul.bf16.gmra.mxu0 %v1258
      %v1768 = vpop.f32.mrf.mxu0
      %v1769 = vadd.f32 0.0, %v1768
      %v1770 = vpop.f32.mrf.mxu0
      %v1771 = vadd.f32 0.0, %v1770
      %1772 = vmatmul.bf16.gmra.mxu0 %v1261
      %v1773 = vpop.f32.mrf.mxu0
      %v1774 = vadd.f32 0.0, %v1773
      %v1775 = vpop.f32.mrf.mxu0
      %v1776 = vadd.f32 0.0, %v1775
      %1777 = vmatmul.bf16.gmra.mxu0 %v1264
      %v1778 = vpop.f32.mrf.mxu0
      %v1779 = vadd.f32 0.0, %v1778
      %v1780 = vpop.f32.mrf.mxu0
      %v1781 = vadd.f32 0.0, %v1780
      %1782 = vmatmul.bf16.gmra.mxu0 %v1694
      %v1783 = vpop.f32.mrf.mxu0
      %v1784 = vadd.f32 0.0, %v1783
      %v1785 = vpop.f32.mrf.mxu0
      %v1786 = vadd.f32 0.0, %v1785
      %1787 = vdwg.mxu0
      %v1788 = vadd.f32 %v1648, %v1709
      %v1789 = vadd.f32 %v1649, %v1711
      %v1790 = vadd.f32 %v1650, %v1714
      %v1791 = vadd.f32 %v1651, %v1716
      %v1792 = vadd.f32 %v1652, %v1719
      %v1793 = vadd.f32 %v1653, %v1721
      %v1794 = vadd.f32 %v1654, %v1724
      %v1795 = vadd.f32 %v1655, %v1726
      %v1796 = vadd.f32 %v1656, %v1729
      %v1797 = vadd.f32 %v1657, %v1731
      %v1798 = vadd.f32 %v1658, %v1734
      %v1799 = vadd.f32 %v1659, %v1736
      %v1800 = vadd.f32 %v1660, %v1739
      %v1801 = vadd.f32 %v1661, %v1741
      %v1802 = vadd.f32 %v1662, %v1744
      %v1803 = vadd.f32 %v1663, %v1746
      %v1804 = vadd.f32 %v1664, %v1749
      %v1805 = vadd.f32 %v1665, %v1751
      %v1806 = vadd.f32 %v1666, %v1754
      %v1807 = vadd.f32 %v1667, %v1756
      %v1808 = vadd.f32 %v1668, %v1759
      %v1809 = vadd.f32 %v1669, %v1761
      %v1810 = vadd.f32 %v1670, %v1764
      %v1811 = vadd.f32 %v1671, %v1766
      %v1812 = vadd.f32 %v1672, %v1769
      %v1813 = vadd.f32 %v1673, %v1771
      %v1814 = vadd.f32 %v1674, %v1774
      %v1815 = vadd.f32 %v1675, %v1776
      %v1816 = vadd.f32 %v1676, %v1779
      %v1817 = vadd.f32 %v1677, %v1781
      %v1818 = vadd.f32 %v1678, %v1784
      %v1819 = vadd.f32 %v1679, %v1786
      %s1820 = scalar_lea.vmem %s1, 12
      %v1821 = vld [vmem:[%s1820] sm:$0x3]
      %v1824 = vunpack.c.l.b16 %v234
      %v1825 = vunpack.c.l.b16 %v235
      %v1826 = vpack.c.b16 %v1825, %v1824
      %v1828 = vsel %vm675, %v1826, 0
      %v1831 = vsel %vm724, %v1821, 0
      %1833 = vmatpush.bf16.msra.mxu0 0
      %1834 = vmatpush.bf16.msra.mxu0 0
      %1835 = vmatpush.bf16.msra.mxu0 0
      %1836 = vmatpush.bf16.msra.mxu0 0
      %1837 = vmatpush.bf16.msra.mxu0 0
      %1838 = vmatpush.bf16.msra.mxu0 0
      %1839 = vmatpush.bf16.msra.mxu0 0
      %1840 = vmatpush.bf16.msra.mxu0 %v1831
      %1841 = vmatmul.bf16.gmra.mxu0 %v904
      %v1842 = vpop.f32.mrf.mxu0
      %v1843 = vadd.f32 0.0, %v1842
      %v1844 = vpop.f32.mrf.mxu0
      %v1845 = vadd.f32 0.0, %v1844
      %1846 = vmatmul.bf16.gmra.mxu0 %v907
      %v1847 = vpop.f32.mrf.mxu0
      %v1848 = vadd.f32 0.0, %v1847
      %v1849 = vpop.f32.mrf.mxu0
      %v1850 = vadd.f32 0.0, %v1849
      %1851 = vmatmul.bf16.gmra.mxu0 %v910
      %v1852 = vpop.f32.mrf.mxu0
      %v1853 = vadd.f32 0.0, %v1852
      %v1854 = vpop.f32.mrf.mxu0
      %v1855 = vadd.f32 0.0, %v1854
      %1856 = vmatmul.bf16.gmra.mxu0 %v913
      %v1857 = vpop.f32.mrf.mxu0
      %v1858 = vadd.f32 0.0, %v1857
      %v1859 = vpop.f32.mrf.mxu0
      %v1860 = vadd.f32 0.0, %v1859
      %1861 = vmatmul.bf16.gmra.mxu0 %v916
      %v1862 = vpop.f32.mrf.mxu0
      %v1863 = vadd.f32 0.0, %v1862
      %v1864 = vpop.f32.mrf.mxu0
      %v1865 = vadd.f32 0.0, %v1864
      %1866 = vmatmul.bf16.gmra.mxu0 %v919
      %v1867 = vpop.f32.mrf.mxu0
      %v1868 = vadd.f32 0.0, %v1867
      %v1869 = vpop.f32.mrf.mxu0
      %v1870 = vadd.f32 0.0, %v1869
      %1871 = vmatmul.bf16.gmra.mxu0 %v922
      %v1872 = vpop.f32.mrf.mxu0
      %v1873 = vadd.f32 0.0, %v1872
      %v1874 = vpop.f32.mrf.mxu0
      %v1875 = vadd.f32 0.0, %v1874
      %1876 = vmatmul.bf16.gmra.mxu0 %v925
      %v1877 = vpop.f32.mrf.mxu0
      %v1878 = vadd.f32 0.0, %v1877
      %v1879 = vpop.f32.mrf.mxu0
      %v1880 = vadd.f32 0.0, %v1879
      %1881 = vmatmul.bf16.gmra.mxu0 %v928
      %v1882 = vpop.f32.mrf.mxu0
      %v1883 = vadd.f32 0.0, %v1882
      %v1884 = vpop.f32.mrf.mxu0
      %v1885 = vadd.f32 0.0, %v1884
      %1886 = vmatmul.bf16.gmra.mxu0 %v931
      %v1887 = vpop.f32.mrf.mxu0
      %v1888 = vadd.f32 0.0, %v1887
      %v1889 = vpop.f32.mrf.mxu0
      %v1890 = vadd.f32 0.0, %v1889
      %1891 = vmatmul.bf16.gmra.mxu0 %v934
      %v1892 = vpop.f32.mrf.mxu0
      %v1893 = vadd.f32 0.0, %v1892
      %v1894 = vpop.f32.mrf.mxu0
      %v1895 = vadd.f32 0.0, %v1894
      %1896 = vmatmul.bf16.gmra.mxu0 %v937
      %v1897 = vpop.f32.mrf.mxu0
      %v1898 = vadd.f32 0.0, %v1897
      %v1899 = vpop.f32.mrf.mxu0
      %v1900 = vadd.f32 0.0, %v1899
      %1901 = vmatmul.bf16.gmra.mxu0 %v940
      %v1902 = vpop.f32.mrf.mxu0
      %v1903 = vadd.f32 0.0, %v1902
      %v1904 = vpop.f32.mrf.mxu0
      %v1905 = vadd.f32 0.0, %v1904
      %1906 = vmatmul.bf16.gmra.mxu0 %v943
      %v1907 = vpop.f32.mrf.mxu0
      %v1908 = vadd.f32 0.0, %v1907
      %v1909 = vpop.f32.mrf.mxu0
      %v1910 = vadd.f32 0.0, %v1909
      %1911 = vmatmul.bf16.gmra.mxu0 %v1398
      %v1912 = vpop.f32.mrf.mxu0
      %v1913 = vadd.f32 0.0, %v1912
      %v1914 = vpop.f32.mrf.mxu0
      %v1915 = vadd.f32 0.0, %v1914
      %1916 = vmatmul.bf16.gmra.mxu0 %v1828
      %v1917 = vpop.f32.mrf.mxu0
      %v1918 = vadd.f32 0.0, %v1917
      %v1919 = vpop.f32.mrf.mxu0
      %v1920 = vadd.f32 0.0, %v1919
      %1921 = vdwg.mxu0
      %v1922 = vadd.f32 %v1788, %v1843
      %v1923 = vadd.f32 %v1789, %v1845
      %v1924 = vadd.f32 %v1790, %v1848
      %v1925 = vadd.f32 %v1791, %v1850
      %v1926 = vadd.f32 %v1792, %v1853
      %v1927 = vadd.f32 %v1793, %v1855
      %v1928 = vadd.f32 %v1794, %v1858
      %v1929 = vadd.f32 %v1795, %v1860
      %v1930 = vadd.f32 %v1796, %v1863
      %v1931 = vadd.f32 %v1797, %v1865
      %v1932 = vadd.f32 %v1798, %v1868
      %v1933 = vadd.f32 %v1799, %v1870
      %v1934 = vadd.f32 %v1800, %v1873
      %v1935 = vadd.f32 %v1801, %v1875
      %v1936 = vadd.f32 %v1802, %v1878
      %v1937 = vadd.f32 %v1803, %v1880
      %v1938 = vadd.f32 %v1804, %v1883
      %v1939 = vadd.f32 %v1805, %v1885
      %v1940 = vadd.f32 %v1806, %v1888
      %v1941 = vadd.f32 %v1807, %v1890
      %v1942 = vadd.f32 %v1808, %v1893
      %v1943 = vadd.f32 %v1809, %v1895
      %v1944 = vadd.f32 %v1810, %v1898
      %v1945 = vadd.f32 %v1811, %v1900
      %v1946 = vadd.f32 %v1812, %v1903
      %v1947 = vadd.f32 %v1813, %v1905
      %v1948 = vadd.f32 %v1814, %v1908
      %v1949 = vadd.f32 %v1815, %v1910
      %v1950 = vadd.f32 %v1816, %v1913
      %v1951 = vadd.f32 %v1817, %v1915
      %v1952 = vadd.f32 %v1818, %v1918
      %v1953 = vadd.f32 %v1819, %v1920
      %v1955 = vshrl.u32 %v234, 16
      %v1957 = vrot.slane %v1955, 4
      %v1958 = vshll.u32 %v234, 16
      %v1960 = vrot.slane %v1958, 5
      %v1961 = vor.u32 %v1957, %v1960
      %v1962 = vrot.slane %v1961, 4
      %v1964 = vshll.u32 %v235, 16
      %v1966 = vrot.slane %v1964, 5
      %v1967 = vsel %vm240, %v1962, %v1966
      %v1968 = vshrl.u32 %v235, 16
      %v1970 = vrot.slane %v1968, 4
      %v1971 = vor.u32 %v1970, %v1966
      %v1972 = vrot.slane %v1971, 4
      %v1974 = vshll.u32 %v236, 16
      %v1976 = vrot.slane %v1974, 5
      %v1977 = vsel %vm240, %v1972, %v1976
      %s1978 = scalar_lea.vmem %s1, 14
      %v1979 = vld [vmem:[%s1978] sm:$0x3]
      %v1980 = vunpack.c.l.b16 %v1967
      %v1981 = vunpack.c.l.b16 %v1977
      %v1982 = vpack.c.b16 %v1981, %v1980
      %v1984 = vsel %vm675, %v1982, 0
      %v1987 = vsel %vm724, %v1979, 0
      %1989 = vmatpush.bf16.msra.mxu0 0
      %1990 = vmatpush.bf16.msra.mxu0 0
      %1991 = vmatpush.bf16.msra.mxu0 0
      %1992 = vmatpush.bf16.msra.mxu0 0
      %1993 = vmatpush.bf16.msra.mxu0 0
      %1994 = vmatpush.bf16.msra.mxu0 0
      %1995 = vmatpush.bf16.msra.mxu0 0
      %1996 = vmatpush.bf16.msra.mxu0 %v1987
      %1997 = vmatmul.bf16.gmra.mxu0 %v683
      %v1998 = vpop.f32.mrf.mxu0
      %v1999 = vadd.f32 0.0, %v1998
      %v2000 = vpop.f32.mrf.mxu0
      %v2001 = vadd.f32 0.0, %v2000
      %2002 = vmatmul.bf16.gmra.mxu0 %v686
      %v2003 = vpop.f32.mrf.mxu0
      %v2004 = vadd.f32 0.0, %v2003
      %v2005 = vpop.f32.mrf.mxu0
      %v2006 = vadd.f32 0.0, %v2005
      %2007 = vmatmul.bf16.gmra.mxu0 %v689
      %v2008 = vpop.f32.mrf.mxu0
      %v2009 = vadd.f32 0.0, %v2008
      %v2010 = vpop.f32.mrf.mxu0
      %v2011 = vadd.f32 0.0, %v2010
      %2012 = vmatmul.bf16.gmra.mxu0 %v692
      %v2013 = vpop.f32.mrf.mxu0
      %v2014 = vadd.f32 0.0, %v2013
      %v2015 = vpop.f32.mrf.mxu0
      %v2016 = vadd.f32 0.0, %v2015
      %2017 = vmatmul.bf16.gmra.mxu0 %v695
      %v2018 = vpop.f32.mrf.mxu0
      %v2019 = vadd.f32 0.0, %v2018
      %v2020 = vpop.f32.mrf.mxu0
      %v2021 = vadd.f32 0.0, %v2020
      %2022 = vmatmul.bf16.gmra.mxu0 %v698
      %v2023 = vpop.f32.mrf.mxu0
      %v2024 = vadd.f32 0.0, %v2023
      %v2025 = vpop.f32.mrf.mxu0
      %v2026 = vadd.f32 0.0, %v2025
      %2027 = vmatmul.bf16.gmra.mxu0 %v701
      %v2028 = vpop.f32.mrf.mxu0
      %v2029 = vadd.f32 0.0, %v2028
      %v2030 = vpop.f32.mrf.mxu0
      %v2031 = vadd.f32 0.0, %v2030
      %2032 = vmatmul.bf16.gmra.mxu0 %v704
      %v2033 = vpop.f32.mrf.mxu0
      %v2034 = vadd.f32 0.0, %v2033
      %v2035 = vpop.f32.mrf.mxu0
      %v2036 = vadd.f32 0.0, %v2035
      %2037 = vmatmul.bf16.gmra.mxu0 %v707
      %v2038 = vpop.f32.mrf.mxu0
      %v2039 = vadd.f32 0.0, %v2038
      %v2040 = vpop.f32.mrf.mxu0
      %v2041 = vadd.f32 0.0, %v2040
      %2042 = vmatmul.bf16.gmra.mxu0 %v710
      %v2043 = vpop.f32.mrf.mxu0
      %v2044 = vadd.f32 0.0, %v2043
      %v2045 = vpop.f32.mrf.mxu0
      %v2046 = vadd.f32 0.0, %v2045
      %2047 = vmatmul.bf16.gmra.mxu0 %v713
      %v2048 = vpop.f32.mrf.mxu0
      %v2049 = vadd.f32 0.0, %v2048
      %v2050 = vpop.f32.mrf.mxu0
      %v2051 = vadd.f32 0.0, %v2050
      %2052 = vmatmul.bf16.gmra.mxu0 %v716
      %v2053 = vpop.f32.mrf.mxu0
      %v2054 = vadd.f32 0.0, %v2053
      %v2055 = vpop.f32.mrf.mxu0
      %v2056 = vadd.f32 0.0, %v2055
      %2057 = vmatmul.bf16.gmra.mxu0 %v719
      %v2058 = vpop.f32.mrf.mxu0
      %v2059 = vadd.f32 0.0, %v2058
      %v2060 = vpop.f32.mrf.mxu0
      %v2061 = vadd.f32 0.0, %v2060
      %2062 = vmatmul.bf16.gmra.mxu0 %v722
      %v2063 = vpop.f32.mrf.mxu0
      %v2064 = vadd.f32 0.0, %v2063
      %v2065 = vpop.f32.mrf.mxu0
      %v2066 = vadd.f32 0.0, %v2065
      %2067 = vmatmul.bf16.gmra.mxu0 %v1554
      %v2068 = vpop.f32.mrf.mxu0
      %v2069 = vadd.f32 0.0, %v2068
      %v2070 = vpop.f32.mrf.mxu0
      %v2071 = vadd.f32 0.0, %v2070
      %2072 = vmatmul.bf16.gmra.mxu0 %v1984
      %v2073 = vpop.f32.mrf.mxu0
      %v2074 = vadd.f32 0.0, %v2073
      %v2075 = vpop.f32.mrf.mxu0
      %v2076 = vadd.f32 0.0, %v2075
      %2077 = vdwg.mxu0
      %v2078 = vadd.f32 %v1922, %v1999
      %v2079 = vadd.f32 %v1923, %v2001
      %v2080 = vadd.f32 %v1924, %v2004
      %v2081 = vadd.f32 %v1925, %v2006
      %v2082 = vadd.f32 %v1926, %v2009
      %v2083 = vadd.f32 %v1927, %v2011
      %v2084 = vadd.f32 %v1928, %v2014
      %v2085 = vadd.f32 %v1929, %v2016
      %v2086 = vadd.f32 %v1930, %v2019
      %v2087 = vadd.f32 %v1931, %v2021
      %v2088 = vadd.f32 %v1932, %v2024
      %v2089 = vadd.f32 %v1933, %v2026
      %v2090 = vadd.f32 %v1934, %v2029
      %v2091 = vadd.f32 %v1935, %v2031
      %v2092 = vadd.f32 %v1936, %v2034
      %v2093 = vadd.f32 %v1937, %v2036
      %v2094 = vadd.f32 %v1938, %v2039
      %v2095 = vadd.f32 %v1939, %v2041
      %v2096 = vadd.f32 %v1940, %v2044
      %v2097 = vadd.f32 %v1941, %v2046
      %v2098 = vadd.f32 %v1942, %v2049
      %v2099 = vadd.f32 %v1943, %v2051
      %v2100 = vadd.f32 %v1944, %v2054
      %v2101 = vadd.f32 %v1945, %v2056
      %v2102 = vadd.f32 %v1946, %v2059
      %v2103 = vadd.f32 %v1947, %v2061
      %v2104 = vadd.f32 %v1948, %v2064
      %v2105 = vadd.f32 %v1949, %v2066
      %v2106 = vadd.f32 %v1950, %v2069
      %v2107 = vadd.f32 %v1951, %v2071
      %v2108 = vadd.f32 %v1952, %v2074
      %v2109 = vadd.f32 %v1953, %v2076
      %v2111 = vrot.slane %v234, 5
      %v2112 = vrot.slane %v2111, 4
      %v2113 = vrot.slane %v235, 5
      %v2114 = vsel %vm1055, %v2112, %v2113
      %v2115 = vrot.slane %v2113, 4
      %v2116 = vrot.slane %v236, 5
      %v2117 = vsel %vm1055, %v2115, %v2116
      %s2118 = scalar_lea.vmem %s1, 16
      %v2119 = vld [vmem:[%s2118] sm:$0x3]
      %v2120 = vunpack.c.l.b16 %v2114
      %v2121 = vunpack.c.l.b16 %v2117
      %v2122 = vpack.c.b16 %v2121, %v2120
      %v2124 = vsel %vm675, %v2122, 0
      %v2127 = vsel %vm724, %v2119, 0
      %2129 = vmatpush.bf16.msra.mxu0 0
      %2130 = vmatpush.bf16.msra.mxu0 0
      %2131 = vmatpush.bf16.msra.mxu0 0
      %2132 = vmatpush.bf16.msra.mxu0 0
      %2133 = vmatpush.bf16.msra.mxu0 0
      %2134 = vmatpush.bf16.msra.mxu0 0
      %2135 = vmatpush.bf16.msra.mxu0 0
      %2136 = vmatpush.bf16.msra.mxu0 %v2127
      %2137 = vmatmul.bf16.gmra.mxu0 %v1225
      %v2138 = vpop.f32.mrf.mxu0
      %v2139 = vadd.f32 0.0, %v2138
      %v2140 = vpop.f32.mrf.mxu0
      %v2141 = vadd.f32 0.0, %v2140
      %2142 = vmatmul.bf16.gmra.mxu0 %v1228
      %v2143 = vpop.f32.mrf.mxu0
      %v2144 = vadd.f32 0.0, %v2143
      %v2145 = vpop.f32.mrf.mxu0
      %v2146 = vadd.f32 0.0, %v2145
      %2147 = vmatmul.bf16.gmra.mxu0 %v1231
      %v2148 = vpop.f32.mrf.mxu0
      %v2149 = vadd.f32 0.0, %v2148
      %v2150 = vpop.f32.mrf.mxu0
      %v2151 = vadd.f32 0.0, %v2150
      %2152 = vmatmul.bf16.gmra.mxu0 %v1234
      %v2153 = vpop.f32.mrf.mxu0
      %v2154 = vadd.f32 0.0, %v2153
      %v2155 = vpop.f32.mrf.mxu0
      %v2156 = vadd.f32 0.0, %v2155
      %2157 = vmatmul.bf16.gmra.mxu0 %v1237
      %v2158 = vpop.f32.mrf.mxu0
      %v2159 = vadd.f32 0.0, %v2158
      %v2160 = vpop.f32.mrf.mxu0
      %v2161 = vadd.f32 0.0, %v2160
      %2162 = vmatmul.bf16.gmra.mxu0 %v1240
      %v2163 = vpop.f32.mrf.mxu0
      %v2164 = vadd.f32 0.0, %v2163
      %v2165 = vpop.f32.mrf.mxu0
      %v2166 = vadd.f32 0.0, %v2165
      %2167 = vmatmul.bf16.gmra.mxu0 %v1243
      %v2168 = vpop.f32.mrf.mxu0
      %v2169 = vadd.f32 0.0, %v2168
      %v2170 = vpop.f32.mrf.mxu0
      %v2171 = vadd.f32 0.0, %v2170
      %2172 = vmatmul.bf16.gmra.mxu0 %v1246
      %v2173 = vpop.f32.mrf.mxu0
      %v2174 = vadd.f32 0.0, %v2173
      %v2175 = vpop.f32.mrf.mxu0
      %v2176 = vadd.f32 0.0, %v2175
      %2177 = vmatmul.bf16.gmra.mxu0 %v1249
      %v2178 = vpop.f32.mrf.mxu0
      %v2179 = vadd.f32 0.0, %v2178
      %v2180 = vpop.f32.mrf.mxu0
      %v2181 = vadd.f32 0.0, %v2180
      %2182 = vmatmul.bf16.gmra.mxu0 %v1252
      %v2183 = vpop.f32.mrf.mxu0
      %v2184 = vadd.f32 0.0, %v2183
      %v2185 = vpop.f32.mrf.mxu0
      %v2186 = vadd.f32 0.0, %v2185
      %2187 = vmatmul.bf16.gmra.mxu0 %v1255
      %v2188 = vpop.f32.mrf.mxu0
      %v2189 = vadd.f32 0.0, %v2188
      %v2190 = vpop.f32.mrf.mxu0
      %v2191 = vadd.f32 0.0, %v2190
      %2192 = vmatmul.bf16.gmra.mxu0 %v1258
      %v2193 = vpop.f32.mrf.mxu0
      %v2194 = vadd.f32 0.0, %v2193
      %v2195 = vpop.f32.mrf.mxu0
      %v2196 = vadd.f32 0.0, %v2195
      %2197 = vmatmul.bf16.gmra.mxu0 %v1261
      %v2198 = vpop.f32.mrf.mxu0
      %v2199 = vadd.f32 0.0, %v2198
      %v2200 = vpop.f32.mrf.mxu0
      %v2201 = vadd.f32 0.0, %v2200
      %2202 = vmatmul.bf16.gmra.mxu0 %v1264
      %v2203 = vpop.f32.mrf.mxu0
      %v2204 = vadd.f32 0.0, %v2203
      %v2205 = vpop.f32.mrf.mxu0
      %v2206 = vadd.f32 0.0, %v2205
      %2207 = vmatmul.bf16.gmra.mxu0 %v1694
      %v2208 = vpop.f32.mrf.mxu0
      %v2209 = vadd.f32 0.0, %v2208
      %v2210 = vpop.f32.mrf.mxu0
      %v2211 = vadd.f32 0.0, %v2210
      %2212 = vmatmul.bf16.gmra.mxu0 %v2124
      %v2213 = vpop.f32.mrf.mxu0
      %v2214 = vadd.f32 0.0, %v2213
      %v2215 = vpop.f32.mrf.mxu0
      %v2216 = vadd.f32 0.0, %v2215
      %2217 = vdwg.mxu0
      %v2218 = vadd.f32 %v2078, %v2139
      %v2219 = vadd.f32 %v2079, %v2141
      %v2220 = vadd.f32 %v2080, %v2144
      %v2221 = vadd.f32 %v2081, %v2146
      %v2222 = vadd.f32 %v2082, %v2149
      %v2223 = vadd.f32 %v2083, %v2151
      %v2224 = vadd.f32 %v2084, %v2154
      %v2225 = vadd.f32 %v2085, %v2156
      %v2226 = vadd.f32 %v2086, %v2159
      %v2227 = vadd.f32 %v2087, %v2161
      %v2228 = vadd.f32 %v2088, %v2164
      %v2229 = vadd.f32 %v2089, %v2166
      %v2230 = vadd.f32 %v2090, %v2169
      %v2231 = vadd.f32 %v2091, %v2171
      %v2232 = vadd.f32 %v2092, %v2174
      %v2233 = vadd.f32 %v2093, %v2176
      %v2234 = vadd.f32 %v2094, %v2179
      %v2235 = vadd.f32 %v2095, %v2181
      %v2236 = vadd.f32 %v2096, %v2184
      %v2237 = vadd.f32 %v2097, %v2186
      %v2238 = vadd.f32 %v2098, %v2189
      %v2239 = vadd.f32 %v2099, %v2191
      %v2240 = vadd.f32 %v2100, %v2194
      %v2241 = vadd.f32 %v2101, %v2196
      %v2242 = vadd.f32 %v2102, %v2199
      %v2243 = vadd.f32 %v2103, %v2201
      %v2244 = vadd.f32 %v2104, %v2204
      %v2245 = vadd.f32 %v2105, %v2206
      %v2246 = vadd.f32 %v2106, %v2209
      %v2247 = vadd.f32 %v2107, %v2211
      %v2248 = vadd.f32 %v2108, %v2214
      %v2249 = vadd.f32 %v2109, %v2216
      %v2250 = vadd.f32 %v2218, %v2219
      %v2251 = vadd.f32 %v2250, %v2220
      %v2252 = vadd.f32 %v2251, %v2221
      %v2253 = vadd.f32 %v2252, %v2222
      %v2254 = vadd.f32 %v2253, %v2223
      %v2255 = vadd.f32 %v2254, %v2224
      %v2256 = vadd.f32 %v2255, %v2225
      %v2257 = vadd.f32 %v2256, %v2226
      %v2258 = vadd.f32 %v2257, %v2227
      %v2259 = vadd.f32 %v2258, %v2228
      %v2260 = vadd.f32 %v2259, %v2229
      %v2261 = vadd.f32 %v2260, %v2230
      %v2262 = vadd.f32 %v2261, %v2231
      %v2263 = vadd.f32 %v2262, %v2232
      %v2264 = vadd.f32 %v2263, %v2233
      %v2265 = vadd.f32 %v2264, %v2234
      %v2266 = vadd.f32 %v2265, %v2235
      %v2267 = vadd.f32 %v2266, %v2236
      %v2268 = vadd.f32 %v2267, %v2237
      %v2269 = vadd.f32 %v2268, %v2238
      %v2270 = vadd.f32 %v2269, %v2239
      %v2271 = vadd.f32 %v2270, %v2240
      %v2272 = vadd.f32 %v2271, %v2241
      %v2273 = vadd.f32 %v2272, %v2242
      %v2274 = vadd.f32 %v2273, %v2243
      %v2275 = vadd.f32 %v2274, %v2244
      %v2276 = vadd.f32 %v2275, %v2245
      %v2277 = vadd.f32 %v2276, %v2246
      %v2278 = vadd.f32 %v2277, %v2247
      %v2279 = vadd.f32 %v2278, %v2248
      %v2280 = vadd.f32 %v2279, %v2249
      %v2281 = vrot.slane %v2280, 4
      %v2282 = vadd.f32 %v2280, %v2281
      %v2283 = vrot.slane %v2282, 2
      %v2284 = vadd.f32 %v2282, %v2283
      %v2285 = vrot.slane %v2284, 1
      %v2286 = vadd.f32 %v2284, %v2285
      %2287 = vst [vmem:[%s181] sm:$0x1] %v2286
      %v2288 = vmul.f32 %v2218, %v2218
      %v2289 = vmul.f32 %v2219, %v2219
      %v2290 = vmul.f32 %v2220, %v2220
      %v2291 = vmul.f32 %v2221, %v2221
      %v2292 = vmul.f32 %v2222, %v2222
      %v2293 = vmul.f32 %v2223, %v2223
      %v2294 = vmul.f32 %v2224, %v2224
      %v2295 = vmul.f32 %v2225, %v2225
      %v2296 = vmul.f32 %v2226, %v2226
      %v2297 = vmul.f32 %v2227, %v2227
      %v2298 = vmul.f32 %v2228, %v2228
      %v2299 = vmul.f32 %v2229, %v2229
      %v2300 = vmul.f32 %v2230, %v2230
      %v2301 = vmul.f32 %v2231, %v2231
      %v2302 = vmul.f32 %v2232, %v2232
      %v2303 = vmul.f32 %v2233, %v2233
      %v2304 = vmul.f32 %v2234, %v2234
      %v2305 = vmul.f32 %v2235, %v2235
      %v2306 = vmul.f32 %v2236, %v2236
      %v2307 = vmul.f32 %v2237, %v2237
      %v2308 = vmul.f32 %v2238, %v2238
      %v2309 = vmul.f32 %v2239, %v2239
      %v2310 = vmul.f32 %v2240, %v2240
      %v2311 = vmul.f32 %v2241, %v2241
      %v2312 = vmul.f32 %v2242, %v2242
      %v2313 = vmul.f32 %v2243, %v2243
      %v2314 = vmul.f32 %v2244, %v2244
      %v2315 = vmul.f32 %v2245, %v2245
      %v2316 = vmul.f32 %v2246, %v2246
      %v2317 = vmul.f32 %v2247, %v2247
      %v2318 = vmul.f32 %v2248, %v2248
      %v2319 = vmul.f32 %v2249, %v2249
      %v2320 = vadd.f32 %v2288, %v2289
      %v2321 = vadd.f32 %v2320, %v2290
      %v2322 = vadd.f32 %v2321, %v2291
      %v2323 = vadd.f32 %v2322, %v2292
      %v2324 = vadd.f32 %v2323, %v2293
      %v2325 = vadd.f32 %v2324, %v2294
      %v2326 = vadd.f32 %v2325, %v2295
      %v2327 = vadd.f32 %v2326, %v2296
      %v2328 = vadd.f32 %v2327, %v2297
      %v2329 = vadd.f32 %v2328, %v2298
      %v2330 = vadd.f32 %v2329, %v2299
      %v2331 = vadd.f32 %v2330, %v2300
      %v2332 = vadd.f32 %v2331, %v2301
      %v2333 = vadd.f32 %v2332, %v2302
      %v2334 = vadd.f32 %v2333, %v2303
      %v2335 = vadd.f32 %v2334, %v2304
      %v2336 = vadd.f32 %v2335, %v2305
      %v2337 = vadd.f32 %v2336, %v2306
      %v2338 = vadd.f32 %v2337, %v2307
      %v2339 = vadd.f32 %v2338, %v2308
      %v2340 = vadd.f32 %v2339, %v2309
      %v2341 = vadd.f32 %v2340, %v2310
      %v2342 = vadd.f32 %v2341, %v2311
      %v2343 = vadd.f32 %v2342, %v2312
      %v2344 = vadd.f32 %v2343, %v2313
      %v2345 = vadd.f32 %v2344, %v2314
      %v2346 = vadd.f32 %v2345, %v2315
      %v2347 = vadd.f32 %v2346, %v2316
      %v2348 = vadd.f32 %v2347, %v2317
      %v2349 = vadd.f32 %v2348, %v2318
      %v2350 = vadd.f32 %v2349, %v2319
      %v2351 = vrot.slane %v2350, 4
      %v2352 = vadd.f32 %v2350, %v2351
      %v2353 = vrot.slane %v2352, 2
      %v2354 = vadd.f32 %v2352, %v2353
      %v2355 = vrot.slane %v2354, 1
      %v2356 = vadd.f32 %v2354, %v2355
      %2357 = vst [vmem:[%s181 + $0x1] sm:$0x1] %v2356
      %2358 = vxpose.xlu0.b32.start [1/16] %v2218, 128
      %2359 = vxpose.xlu0.b32.cont [2/16] %v2219, 128
      %2360 = vxpose.xlu0.b32.cont [3/16] %v2220, 128
      %2361 = vxpose.xlu0.b32.cont [4/16] %v2221, 128
      %2362 = vxpose.xlu0.b32.cont [5/16] %v2222, 128
      %2363 = vxpose.xlu0.b32.cont [6/16] %v2223, 128
      %2364 = vxpose.xlu0.b32.cont [7/16] %v2224, 128
      %2365 = vxpose.xlu0.b32.cont [8/16] %v2225, 128
      %2366 = vxpose.xlu0.b32.cont [9/16] %v2226, 128
      %2367 = vxpose.xlu0.b32.cont [10/16] %v2227, 128
      %2368 = vxpose.xlu0.b32.cont [11/16] %v2228, 128
      %2369 = vxpose.xlu0.b32.cont [12/16] %v2229, 128
      %2370 = vxpose.xlu0.b32.cont [13/16] %v2230, 128
      %2371 = vxpose.xlu0.b32.cont [14/16] %v2231, 128
      %2372 = vxpose.xlu0.b32.cont [15/16] %v2232, 128
      %2373 = vxpose.xlu0.b32.end [16/16] %v2233, 128
      %v2374 = vpop.trf.xlu0
      %v2375 = vpop.trf.xlu0
      %v2376 = vpop.trf.xlu0
      %v2377 = vpop.trf.xlu0
      %v2378 = vpop.trf.xlu0
      %v2379 = vpop.trf.xlu0
      %v2380 = vpop.trf.xlu0
      %v2381 = vpop.trf.xlu0
      %v2382 = vpop.trf.xlu0
      %v2383 = vpop.trf.xlu0
      %v2384 = vpop.trf.xlu0
      %v2385 = vpop.trf.xlu0
      %v2386 = vpop.trf.xlu0
      %v2387 = vpop.trf.xlu0
      %v2388 = vpop.trf.xlu0
      %v2389 = vpop.trf.xlu0
      %2390 = vxpose.xlu0.b32.start [1/16] %v2234, 128
      %2391 = vxpose.xlu0.b32.cont [2/16] %v2235, 128
      %2392 = vxpose.xlu0.b32.cont [3/16] %v2236, 128
      %2393 = vxpose.xlu0.b32.cont [4/16] %v2237, 128
      %2394 = vxpose.xlu0.b32.cont [5/16] %v2238, 128
      %2395 = vxpose.xlu0.b32.cont [6/16] %v2239, 128
      %2396 = vxpose.xlu0.b32.cont [7/16] %v2240, 128
      %2397 = vxpose.xlu0.b32.cont [8/16] %v2241, 128
      %2398 = vxpose.xlu0.b32.cont [9/16] %v2242, 128
      %2399 = vxpose.xlu0.b32.cont [10/16] %v2243, 128
      %2400 = vxpose.xlu0.b32.cont [11/16] %v2244, 128
      %2401 = vxpose.xlu0.b32.cont [12/16] %v2245, 128
      %2402 = vxpose.xlu0.b32.cont [13/16] %v2246, 128
      %2403 = vxpose.xlu0.b32.cont [14/16] %v2247, 128
      %2404 = vxpose.xlu0.b32.cont [15/16] %v2248, 128
      %2405 = vxpose.xlu0.b32.end [16/16] %v2249, 128
      %v2406 = vpop.trf.xlu0
      %v2407 = vpop.trf.xlu0
      %v2408 = vpop.trf.xlu0
      %v2409 = vpop.trf.xlu0
      %v2410 = vpop.trf.xlu0
      %v2411 = vpop.trf.xlu0
      %v2412 = vpop.trf.xlu0
      %v2413 = vpop.trf.xlu0
      %v2414 = vpop.trf.xlu0
      %v2415 = vpop.trf.xlu0
      %v2416 = vpop.trf.xlu0
      %v2417 = vpop.trf.xlu0
      %v2418 = vpop.trf.xlu0
      %v2419 = vpop.trf.xlu0
      %v2420 = vpop.trf.xlu0
      %v2421 = vpop.trf.xlu0
      %2422 = vst [vmem:[%s177] sm:$0xff] %v2374
      %2423 = vst [vmem:[%s177 + $0x8] sm:$0xff] %v2406
      %p2424 = scmp.lt.s32.totalorder %s15, 1
      %s2425 = scalar_select %p2424, %s15, 1
      %s2426 = smul.addr %s2425, 2
      %s2427 = smul.addr %s2426, 8
      %s2428 = scalar_lea.vmem %s2, %s2427
      %p2429 = scmp.lt.s32.totalorder %s15, 1
      %s2430 = scalar_select %p2429, %s15, 1
      %s2431 = smul.addr %s2430, 8
      %s2432 = scalar_lea.vmem %s3, %s2431
      // Predicated region
      $region29: #{gated_conv_bn_forward.6} parent=27 // pred_check
        %p2433 = pneg %p80
      $region30: #{gated_conv_bn_forward.6} parent=27 // pred_check_branch
        %2435 = sbr.rel (%p2433) target = $region32
      $region31: #{gated_conv_bn_forward.6} parent=27 // pred_region
        _
      $region32: #{gated_conv_bn_forward.6} parent=27 // pred_fallthru
        _
      // Predicated region
      $region33: #{gated_conv_bn_forward.6} parent=27 // pred_check
        %p2436 = pneg %p106
      $region34: #{gated_conv_bn_forward.6} parent=27 // pred_check_branch
        %2438 = sbr.rel (%p2436) target = $region36
      $region35: #{gated_conv_bn_forward.6} parent=27 // pred_region
        _
      $region36: #{gated_conv_bn_forward.6} parent=27 // pred_fallthru
        _
    $region28: #{gated_conv_bn_forward.6} parent=5 // pred_fallthru
      _
    %p2439 = scmp.le.s32.totalorder 2, %s10
    // Predicated region
    $region37: #{gated_conv_bn_forward.6} parent=5 // pred_check
      %p2440 = pneg %p2439
    $region38: #{gated_conv_bn_forward.6} parent=5 // pred_check_branch
      %2442 = sbr.rel (%p2440) target = $region40
    $region39: #{gated_conv_bn_forward.6} parent=5 // pred_region
      %s2443 = ssub.s32 %s10, 2
      // Predicated region
      $region41: #{gated_conv_bn_forward.6} parent=39 // pred_check
        %p2444 = pneg %p86
      $region42: #{gated_conv_bn_forward.6} parent=39 // pred_check_branch
        %2446 = sbr.rel (%p2444) target = $region44
      $region43: #{gated_conv_bn_forward.6} parent=39 // pred_region
        %p2447 = scmp.lt.s32.totalorder %s16, 1
        %s2448 = scalar_select %p2447, %s16, 1
        %s2449 = smul.addr %s2448, 2
        %s2450 = smul.addr %s2449, 8
        %s2451 = scalar_lea.vmem %s2, %s2450
      $region44: #{gated_conv_bn_forward.6} parent=39 // pred_fallthru
        _
      // Predicated region
      $region45: #{gated_conv_bn_forward.6} parent=39 // pred_check
        %p2452 = pneg %p112
      $region46: #{gated_conv_bn_forward.6} parent=39 // pred_check_branch
        %2454 = sbr.rel (%p2452) target = $region48
      $region47: #{gated_conv_bn_forward.6} parent=39 // pred_region
        %p2455 = scmp.lt.s32.totalorder %s16, 1
        %s2456 = scalar_select %p2455, %s16, 1
        %s2457 = smul.addr %s2456, 8
        %s2458 = scalar_lea.vmem %s3, %s2457
      $region48: #{gated_conv_bn_forward.6} parent=39 // pred_fallthru
        _
    $region40: #{gated_conv_bn_forward.6} parent=5 // pred_fallthru
      _
  $region6: #{gated_conv_bn_forward.6} parent=0 // loop_footer
    %s14 = sadd.s32 1, %s10
  $region7: #{gated_conv_bn_forward.6} parent=0 // loop_footer_branch
    %9 = sbr.rel target = $region3
  $region8: #{gated_conv_bn_forward.6} parent=0 // loop_exit
    _

</llo_original>
